<compile_context>
chip_gen: v5e
topology: v5e:2x2
jax: 0.10.0
libtpu: 0.0.40
codegen_flags: <defaults>
</compile_context>

<pallas_src>
import jax
import jax.numpy as jnp
from jax import lax
from jax.experimental import pallas as pl
from jax.experimental.pallas import tpu as pltpu

# ---------------- config ----------------
V = 16          # len(cfg.num_sequence)
E = 32          # cfg.embedding_dim
H = 32          # cfg.hidden_size
MAX_LEN = 8     # cfg.max_len
T = MAX_LEN + 2
PAD = 0
SOS = 1
B = 8           # batch size


# ---------------- Pallas kernel ----------------
def decoder_kernel(enc_h_ref, w_blk_ref, b_blk_ref, wfc_ref, bfc_ref,
                   out_ref, hid_out_ref):
    """Single invocation; all T decode steps run inside (unrolled fori_loop)."""
    # Hoisted constants (computed/loaded once, reused every step).
    col_ids = lax.broadcasted_iota(jnp.int32, (B, V), 1)
    w_blk = w_blk_ref[...]          # (V+H, 6H)  block-diag [[emb@W_ih^T, 0],[0, W_hh^T]]
    b_blk = b_blk_ref[...]          # (1, 6H)    [b_ih | b_hh]
    wfc = wfc_ref[...]              # (H, V)
    bfc = bfc_ref[...]              # (1, V)

    h0 = enc_h_ref[...]                              # (B, H)
    onehot0 = (col_ids == SOS).astype(jnp.float32)   # (B, V)  SOS one-hot

    def step(t, carry):
        h, onehot = carry
        # [gi | gh] in ONE MXU push: (B, V+H) @ (V+H, 6H)
        x = jnp.concatenate([onehot, h], axis=-1)                              # (B, V+H)
        g = jnp.dot(x, w_blk, preferred_element_type=jnp.float32) + b_blk      # (B, 6H)

        # GRU cell (PyTorch gate order: r, z, n); gi = g[:, :3H], gh = g[:, 3H:]
        r = jax.nn.sigmoid(g[:, 0:H] + g[:, 3 * H:4 * H])
        z = jax.nn.sigmoid(g[:, H:2 * H] + g[:, 4 * H:5 * H])
        n = jnp.tanh(g[:, 2 * H:3 * H] + r * g[:, 5 * H:6 * H])
        h_new = (1.0 - z) * n + z * h                                          # (B, H)

        # Linear head -> raw logits (log_softmax deferred to after the loop)
        logits = jnp.dot(h_new, wfc, preferred_element_type=jnp.float32) + bfc  # (B, V)
        out_ref[t] = logits

        # Greedy feedback from raw logits (argmax invariant under log_softmax).
        # topk(.,1) == first max index -> matches PyTorch tie-break.
        is_max = logits == jnp.max(logits, axis=-1, keepdims=True)
        idx = jnp.min(jnp.where(is_max, col_ids, V), axis=-1, keepdims=True)    # (B, 1)
        onehot_next = (col_ids == idx).astype(jnp.float32)
        return h_new, onehot_next

    h_fin, _ = lax.fori_loop(0, T, step, (h0, onehot0), unroll=True)
    hid_out_ref[...] = h_fin

    # One vectorized log_softmax over the whole (T, B, V) block (off the serial path).
    logits_all = out_ref[...]
    m = jnp.max(logits_all, axis=-1, keepdims=True)
    sh = logits_all - m
    out_ref[...] = sh - jnp.log(jnp.sum(jnp.exp(sh), axis=-1, keepdims=True))


@jax.jit
def decoder_forward(target, encoder_hidden, params):
    """target: (B, *) int32 (only batch size is used, as in the PyTorch module)
       encoder_hidden: (1, B, H) float32
       returns (decoder_outputs (B, T, V), decoder_hidden (1, B, H))"""
    del target  # only shape[0] == B matters; B is static here
    enc_h = encoder_hidden[0]  # (B, H)

    emb, w_ih, w_hh, b_ih, b_hh, w_fc, b_fc = (
        params["emb"], params["w_ih"], params["w_hh"], params["b_ih"],
        params["b_hh"], params["w_fc"], params["b_fc"])

    # Pre-fuse embedding into the input-gate weight (exact: lookup == one-hot matmul),
    # then build the block-diagonal fused gate weight and fused bias.
    w_emb_ih = jnp.dot(emb, w_ih.T)                 # (V, 3H)
    w_hh_t = w_hh.T                                 # (H, 3H)
    w_blk = jnp.zeros((V + H, 6 * H), jnp.float32)
    w_blk = w_blk.at[:V, :3 * H].set(w_emb_ih)
    w_blk = w_blk.at[V:, 3 * H:].set(w_hh_t)        # (V+H, 6H)
    b_blk = jnp.concatenate([b_ih, b_hh])[None, :]  # (1, 6H)

    wfc_t = w_fc.T                                  # (H, V)
    bfc = b_fc[None, :]                             # (1, V)

    vmem = pl.BlockSpec(memory_space=pltpu.MemorySpace.VMEM)
    step_logprobs, final_h = pl.pallas_call(
        decoder_kernel,
        out_shape=(
            jax.ShapeDtypeStruct((T, B, V), jnp.float32),   # per-step log-probs
            jax.ShapeDtypeStruct((B, H), jnp.float32),      # final hidden
        ),
        in_specs=[vmem] * 5,
        out_specs=(vmem, vmem),
    )(enc_h, w_blk, b_blk, wfc_t, bfc)

    decoder_outputs = jnp.transpose(step_logprobs, (1, 0, 2))   # (B, T, V)
    decoder_hidden = final_h[None, :, :]                        # (1, B, H)
    return decoder_outputs, decoder_hidden


# ---------------- pure-JAX reference (for correctness check) ----------------
def reference_forward(target, encoder_hidden, params):
    del target
    emb, w_ih, w_hh, b_ih, b_hh, w_fc, b_fc = (
        params["emb"], params["w_ih"], params["w_hh"], params["b_ih"],
        params["b_hh"], params["w_fc"], params["b_fc"])
    h0 = encoder_hidden[0]
    x0 = jnp.full((B,), SOS, dtype=jnp.int32)

    def step(carry, _):
        h, idx = carry
        x = emb[idx]                                   # (B, E)
        gi = x @ w_ih.T + b_ih
        gh = h @ w_hh.T + b_hh
        r = jax.nn.sigmoid(gi[:, 0:H] + gh[:, 0:H])
        z = jax.nn.sigmoid(gi[:, H:2 * H] + gh[:, H:2 * H])
        n = jnp.tanh(gi[:, 2 * H:] + r * gh[:, 2 * H:])
        h_new = (1.0 - z) * n + z * h
        ls = jax.nn.log_softmax(h_new @ w_fc.T + b_fc, axis=-1)
        nxt = jnp.argmax(ls, axis=-1).astype(jnp.int32)
        return (h_new, nxt), ls

    (h_fin, _), outs = lax.scan(step, (h0, x0), None, length=T)
    return jnp.transpose(outs, (1, 0, 2)), h_fin[None]


# ---------------- parameter init (deterministic, PyTorch-like) ----------------
def init_params(key):
    ks = jax.random.split(key, 7)
    k = 1.0 / jnp.sqrt(H)
    emb = jax.random.normal(ks[0], (V, E), jnp.float32)
    emb = emb.at[PAD].set(0.0)                                   # padding_idx row = 0
    uni = lambda kk, shape: jax.random.uniform(kk, shape, jnp.float32, -k, k)
    return {
        "emb": emb,
        "w_ih": uni(ks[1], (3 * H, E)),
        "w_hh": uni(ks[2], (3 * H, H)),
        "b_ih": uni(ks[3], (3 * H,)),
        "b_hh": uni(ks[4], (3 * H,)),
        "w_fc": uni(ks[5], (V, H)),
        "b_fc": uni(ks[6], (V,)),
    }


if __name__ == "__main__":
    key = jax.random.PRNGKey(0)
    kp, kh, kt = jax.random.split(key, 3)
    params = init_params(kp)
    encoder_hidden = jax.random.normal(kh, (1, B, H), jnp.float32)
    target = jax.random.randint(kt, (B, T), 0, V, dtype=jnp.int32)  # only batch dim used

    outs, hid = decoder_forward(target, encoder_hidden, params)
    outs = jax.block_until_ready(outs)
    hid = jax.block_until_ready(hid)

    ref_outs, ref_hid = reference_forward(target, encoder_hidden, params)
    assert outs.shape == (B, T, V) and hid.shape == (1, B, H)
    assert jnp.allclose(outs, ref_outs, atol=1e-4, rtol=1e-4)
    assert jnp.allclose(hid, ref_hid, atol=1e-4, rtol=1e-4)

    print("KERNEL_OK")
</pallas_src>

<mosaic_0001>
module attributes {stable_mosaic.version = 11 : i64} {
  func.func @decoder_kernel(%arg0: memref<8x32xf32, #tpu.memory_space<vmem>>, %arg1: memref<48x192xf32, #tpu.memory_space<vmem>>, %arg2: memref<1x192xf32, #tpu.memory_space<vmem>>, %arg3: memref<32x16xf32, #tpu.memory_space<vmem>>, %arg4: memref<1x16xf32, #tpu.memory_space<vmem>>, %arg5: memref<10x8x16xf32, #tpu.memory_space<vmem>>, %arg6: memref<8x32xf32, #tpu.memory_space<vmem>>) attributes {dimension_semantics = [], scalar_prefetch = 0 : i64, scratch_operands = 0 : i64, tpu.core_type = #tpu.core_type<tc>} {
    %0 = tpu.iota {dimensions = array<i32: 1>} : vector<8x16xi32>
    %c0 = arith.constant 0 : index
    %c0_0 = arith.constant 0 : index
    %1 = vector.load %arg1[%c0, %c0_0] : memref<48x192xf32, #tpu.memory_space<vmem>>, vector<48x192xf32>
    %c0_1 = arith.constant 0 : index
    %c0_2 = arith.constant 0 : index
    %2 = vector.load %arg2[%c0_1, %c0_2] : memref<1x192xf32, #tpu.memory_space<vmem>>, vector<1x192xf32>
    %c0_3 = arith.constant 0 : index
    %c0_4 = arith.constant 0 : index
    %3 = vector.load %arg3[%c0_3, %c0_4] : memref<32x16xf32, #tpu.memory_space<vmem>>, vector<32x16xf32>
    %c0_5 = arith.constant 0 : index
    %c0_6 = arith.constant 0 : index
    %4 = vector.load %arg4[%c0_5, %c0_6] : memref<1x16xf32, #tpu.memory_space<vmem>>, vector<1x16xf32>
    %c0_7 = arith.constant 0 : index
    %c0_8 = arith.constant 0 : index
    %5 = vector.load %arg0[%c0_7, %c0_8] : memref<8x32xf32, #tpu.memory_space<vmem>>, vector<8x32xf32>
    %c1_i32 = arith.constant 1 : i32
    %6 = vector.broadcast %c1_i32 : i32 to vector<8x16xi32>
    %7 = arith.cmpi eq, %0, %6 : vector<8x16xi32>
    %8 = arith.extui %7 : vector<8x16xi1> to vector<8x16xi32>
    %9 = arith.sitofp %8 : vector<8x16xi32> to vector<8x16xf32>
    %c0_i32 = arith.constant 0 : i32
    %10 = tpu.concatenate %9, %5 in 1 : vector<8x16xf32>, vector<8x32xf32> -> vector<8x48xf32>
    %cst = arith.constant dense<0.000000e+00> : vector<8x192xf32>
    %11 = tpu.matmul %10, %1, %cst {dimension_numbers = #tpu.dot_dimension_numbers<[1], [0], [0], [1], [0, 0, 1, 1], [], []>} : vector<8x48xf32>, vector<48x192xf32>, vector<8x192xf32> -> vector<8x192xf32>
    %12 = vector.broadcast %2 : vector<1x192xf32> to vector<8x192xf32>
    %13 = arith.addf %11, %12 : vector<8x192xf32>
    %14 = vector.extract_strided_slice %13 {offsets = [0, 0], sizes = [8, 32], strides = [1, 1]} : vector<8x192xf32> to vector<8x32xf32>
    %15 = vector.extract_strided_slice %13 {offsets = [0, 96], sizes = [8, 32], strides = [1, 1]} : vector<8x192xf32> to vector<8x32xf32>
    %16 = arith.addf %14, %15 : vector<8x32xf32>
    %17 = arith.negf %16 : vector<8x32xf32>
    %18 = math.exp %17 : vector<8x32xf32>
    %cst_9 = arith.constant 1.000000e+00 : f32
    %19 = vector.broadcast %cst_9 : f32 to vector<8x32xf32>
    %20 = arith.addf %19, %18 : vector<8x32xf32>
    %21 = arith.divf %19, %20 : vector<8x32xf32>
    %22 = vector.extract_strided_slice %13 {offsets = [0, 32], sizes = [8, 32], strides = [1, 1]} : vector<8x192xf32> to vector<8x32xf32>
    %23 = vector.extract_strided_slice %13 {offsets = [0, 128], sizes = [8, 32], strides = [1, 1]} : vector<8x192xf32> to vector<8x32xf32>
    %24 = arith.addf %22, %23 : vector<8x32xf32>
    %25 = arith.negf %24 : vector<8x32xf32>
    %26 = math.exp %25 : vector<8x32xf32>
    %cst_10 = arith.constant 1.000000e+00 : f32
    %27 = vector.broadcast %cst_10 : f32 to vector<8x32xf32>
    %28 = arith.addf %27, %26 : vector<8x32xf32>
    %29 = arith.divf %27, %28 : vector<8x32xf32>
    %30 = vector.extract_strided_slice %13 {offsets = [0, 64], sizes = [8, 32], strides = [1, 1]} : vector<8x192xf32> to vector<8x32xf32>
    %31 = vector.extract_strided_slice %13 {offsets = [0, 160], sizes = [8, 32], strides = [1, 1]} : vector<8x192xf32> to vector<8x32xf32>
    %32 = arith.mulf %21, %31 : vector<8x32xf32>
    %33 = arith.addf %30, %32 : vector<8x32xf32>
    %34 = math.tanh %33 : vector<8x32xf32>
    %cst_11 = arith.constant 1.000000e+00 : f32
    %35 = vector.broadcast %cst_11 : f32 to vector<8x32xf32>
    %36 = arith.subf %35, %29 : vector<8x32xf32>
    %37 = arith.mulf %36, %34 : vector<8x32xf32>
    %38 = arith.mulf %29, %5 : vector<8x32xf32>
    %39 = arith.addf %37, %38 : vector<8x32xf32>
    %cst_12 = arith.constant dense<0.000000e+00> : vector<8x16xf32>
    %40 = tpu.matmul %39, %3, %cst_12 {dimension_numbers = #tpu.dot_dimension_numbers<[1], [0], [0], [1], [0, 0, 1, 1], [], []>} : vector<8x32xf32>, vector<32x16xf32>, vector<8x16xf32> -> vector<8x16xf32>
    %41 = vector.broadcast %4 : vector<1x16xf32> to vector<8x16xf32>
    %42 = arith.addf %40, %41 : vector<8x16xf32>
    %43 = arith.index_cast %c0_i32 : i32 to index
    %c0_13 = arith.constant 0 : index
    %c0_14 = arith.constant 0 : index
    %44 = vector.load %arg5[%43, %c0_13, %c0_14] : memref<10x8x16xf32, #tpu.memory_space<vmem>>, vector<1x8x16xf32>
    %45 = vector.shape_cast %44 : vector<1x8x16xf32> to vector<8x16xf32>
    %46 = vector.shape_cast %42 : vector<8x16xf32> to vector<1x8x16xf32>
    tpu.vector_store %arg5[%43, %c0_13, %c0_14], %46 {strides = array<i32>} : memref<10x8x16xf32, #tpu.memory_space<vmem>>, vector<1x8x16xf32>,
    %cst_15 = arith.constant dense<0xFF800000> : vector<8xf32>
    %47 = vector.multi_reduction <maximumf>, %42, %cst_15 [1] : vector<8x16xf32> to vector<8xf32>
    %48 = vector.shape_cast %47 : vector<8xf32> to vector<8x1xf32>
    %49 = vector.broadcast %48 : vector<8x1xf32> to vector<8x16xf32>
    %50 = arith.cmpf oeq, %42, %49 : vector<8x16xf32>
    %c16_i32 = arith.constant 16 : i32
    %51 = vector.broadcast %c16_i32 : i32 to vector<8x16xi32>
    %52 = arith.select %50, %0, %51 : vector<8x16xi1>, vector<8x16xi32>
    %cst_16 = arith.constant dense<2147483647> : vector<8xi32>
    %53 = vector.multi_reduction <minsi>, %52, %cst_16 [1] : vector<8x16xi32> to vector<8xi32>
    %54 = vector.shape_cast %53 : vector<8xi32> to vector<8x1xi32>
    %55 = vector.broadcast %54 : vector<8x1xi32> to vector<8x16xi32>
    %56 = arith.cmpi eq, %0, %55 : vector<8x16xi32>
    %57 = arith.extui %56 : vector<8x16xi1> to vector<8x16xi32>
    %58 = arith.sitofp %57 : vector<8x16xi32> to vector<8x16xf32>
    %c1_i32_17 = arith.constant 1 : i32
    %59 = tpu.concatenate %58, %39 in 1 : vector<8x16xf32>, vector<8x32xf32> -> vector<8x48xf32>
    %cst_18 = arith.constant dense<0.000000e+00> : vector<8x192xf32>
    %60 = tpu.matmul %59, %1, %cst_18 {dimension_numbers = #tpu.dot_dimension_numbers<[1], [0], [0], [1], [0, 0, 1, 1], [], []>} : vector<8x48xf32>, vector<48x192xf32>, vector<8x192xf32> -> vector<8x192xf32>
    %61 = vector.broadcast %2 : vector<1x192xf32> to vector<8x192xf32>
    %62 = arith.addf %60, %61 : vector<8x192xf32>
    %63 = vector.extract_strided_slice %62 {offsets = [0, 0], sizes = [8, 32], strides = [1, 1]} : vector<8x192xf32> to vector<8x32xf32>
    %64 = vector.extract_strided_slice %62 {offsets = [0, 96], sizes = [8, 32], strides = [1, 1]} : vector<8x192xf32> to vector<8x32xf32>
    %65 = arith.addf %63, %64 : vector<8x32xf32>
    %66 = arith.negf %65 : vector<8x32xf32>
    %67 = math.exp %66 : vector<8x32xf32>
    %cst_19 = arith.constant 1.000000e+00 : f32
    %68 = vector.broadcast %cst_19 : f32 to vector<8x32xf32>
    %69 = arith.addf %68, %67 : vector<8x32xf32>
    %70 = arith.divf %68, %69 : vector<8x32xf32>
    %71 = vector.extract_strided_slice %62 {offsets = [0, 32], sizes = [8, 32], strides = [1, 1]} : vector<8x192xf32> to vector<8x32xf32>
    %72 = vector.extract_strided_slice %62 {offsets = [0, 128], sizes = [8, 32], strides = [1, 1]} : vector<8x192xf32> to vector<8x32xf32>
    %73 = arith.addf %71, %72 : vector<8x32xf32>
    %74 = arith.negf %73 : vector<8x32xf32>
    %75 = math.exp %74 : vector<8x32xf32>
    %cst_20 = arith.constant 1.000000e+00 : f32
    %76 = vector.broadcast %cst_20 : f32 to vector<8x32xf32>
    %77 = arith.addf %76, %75 : vector<8x32xf32>
    %78 = arith.divf %76, %77 : vector<8x32xf32>
    %79 = vector.extract_strided_slice %62 {offsets = [0, 64], sizes = [8, 32], strides = [1, 1]} : vector<8x192xf32> to vector<8x32xf32>
    %80 = vector.extract_strided_slice %62 {offsets = [0, 160], sizes = [8, 32], strides = [1, 1]} : vector<8x192xf32> to vector<8x32xf32>
    %81 = arith.mulf %70, %80 : vector<8x32xf32>
    %82 = arith.addf %79, %81 : vector<8x32xf32>
    %83 = math.tanh %82 : vector<8x32xf32>
    %cst_21 = arith.constant 1.000000e+00 : f32
    %84 = vector.broadcast %cst_21 : f32 to vector<8x32xf32>
    %85 = arith.subf %84, %78 : vector<8x32xf32>
    %86 = arith.mulf %85, %83 : vector<8x32xf32>
    %87 = arith.mulf %78, %39 : vector<8x32xf32>
    %88 = arith.addf %86, %87 : vector<8x32xf32>
    %cst_22 = arith.constant dense<0.000000e+00> : vector<8x16xf32>
    %89 = tpu.matmul %88, %3, %cst_22 {dimension_numbers = #tpu.dot_dimension_numbers<[1], [0], [0], [1], [0, 0, 1, 1], [], []>} : vector<8x32xf32>, vector<32x16xf32>, vector<8x16xf32> -> vector<8x16xf32>
    %90 = vector.broadcast %4 : vector<1x16xf32> to vector<8x16xf32>
    %91 = arith.addf %89, %90 : vector<8x16xf32>
    %92 = arith.index_cast %c1_i32_17 : i32 to index
    %c0_23 = arith.constant 0 : index
    %c0_24 = arith.constant 0 : index
    %93 = vector.load %arg5[%92, %c0_23, %c0_24] : memref<10x8x16xf32, #tpu.memory_space<vmem>>, vector<1x8x16xf32>
    %94 = vector.shape_cast %93 : vector<1x8x16xf32> to vector<8x16xf32>
    %95 = vector.shape_cast %91 : vector<8x16xf32> to vector<1x8x16xf32>
    tpu.vector_store %arg5[%92, %c0_23, %c0_24], %95 {strides = array<i32>} : memref<10x8x16xf32, #tpu.memory_space<vmem>>, vector<1x8x16xf32>,
    %cst_25 = arith.constant dense<0xFF800000> : vector<8xf32>
    %96 = vector.multi_reduction <maximumf>, %91, %cst_25 [1] : vector<8x16xf32> to vector<8xf32>
    %97 = vector.shape_cast %96 : vector<8xf32> to vector<8x1xf32>
    %98 = vector.broadcast %97 : vector<8x1xf32> to vector<8x16xf32>
    %99 = arith.cmpf oeq, %91, %98 : vector<8x16xf32>
    %c16_i32_26 = arith.constant 16 : i32
    %100 = vector.broadcast %c16_i32_26 : i32 to vector<8x16xi32>
    %101 = arith.select %99, %0, %100 : vector<8x16xi1>, vector<8x16xi32>
    %cst_27 = arith.constant dense<2147483647> : vector<8xi32>
    %102 = vector.multi_reduction <minsi>, %101, %cst_27 [1] : vector<8x16xi32> to vector<8xi32>
    %103 = vector.shape_cast %102 : vector<8xi32> to vector<8x1xi32>
    %104 = vector.broadcast %103 : vector<8x1xi32> to vector<8x16xi32>
    %105 = arith.cmpi eq, %0, %104 : vector<8x16xi32>
    %106 = arith.extui %105 : vector<8x16xi1> to vector<8x16xi32>
    %107 = arith.sitofp %106 : vector<8x16xi32> to vector<8x16xf32>
    %c2_i32 = arith.constant 2 : i32
    %108 = tpu.concatenate %107, %88 in 1 : vector<8x16xf32>, vector<8x32xf32> -> vector<8x48xf32>
    %cst_28 = arith.constant dense<0.000000e+00> : vector<8x192xf32>
    %109 = tpu.matmul %108, %1, %cst_28 {dimension_numbers = #tpu.dot_dimension_numbers<[1], [0], [0], [1], [0, 0, 1, 1], [], []>} : vector<8x48xf32>, vector<48x192xf32>, vector<8x192xf32> -> vector<8x192xf32>
    %110 = vector.broadcast %2 : vector<1x192xf32> to vector<8x192xf32>
    %111 = arith.addf %109, %110 : vector<8x192xf32>
    %112 = vector.extract_strided_slice %111 {offsets = [0, 0], sizes = [8, 32], strides = [1, 1]} : vector<8x192xf32> to vector<8x32xf32>
    %113 = vector.extract_strided_slice %111 {offsets = [0, 96], sizes = [8, 32], strides = [1, 1]} : vector<8x192xf32> to vector<8x32xf32>
    %114 = arith.addf %112, %113 : vector<8x32xf32>
    %115 = arith.negf %114 : vector<8x32xf32>
    %116 = math.exp %115 : vector<8x32xf32>
    %cst_29 = arith.constant 1.000000e+00 : f32
    %117 = vector.broadcast %cst_29 : f32 to vector<8x32xf32>
    %118 = arith.addf %117, %116 : vector<8x32xf32>
    %119 = arith.divf %117, %118 : vector<8x32xf32>
    %120 = vector.extract_strided_slice %111 {offsets = [0, 32], sizes = [8, 32], strides = [1, 1]} : vector<8x192xf32> to vector<8x32xf32>
    %121 = vector.extract_strided_slice %111 {offsets = [0, 128], sizes = [8, 32], strides = [1, 1]} : vector<8x192xf32> to vector<8x32xf32>
    %122 = arith.addf %120, %121 : vector<8x32xf32>
    %123 = arith.negf %122 : vector<8x32xf32>
    %124 = math.exp %123 : vector<8x32xf32>
    %cst_30 = arith.constant 1.000000e+00 : f32
    %125 = vector.broadcast %cst_30 : f32 to vector<8x32xf32>
    %126 = arith.addf %125, %124 : vector<8x32xf32>
    %127 = arith.divf %125, %126 : vector<8x32xf32>
    %128 = vector.extract_strided_slice %111 {offsets = [0, 64], sizes = [8, 32], strides = [1, 1]} : vector<8x192xf32> to vector<8x32xf32>
    %129 = vector.extract_strided_slice %111 {offsets = [0, 160], sizes = [8, 32], strides = [1, 1]} : vector<8x192xf32> to vector<8x32xf32>
    %130 = arith.mulf %119, %129 : vector<8x32xf32>
    %131 = arith.addf %128, %130 : vector<8x32xf32>
    %132 = math.tanh %131 : vector<8x32xf32>
    %cst_31 = arith.constant 1.000000e+00 : f32
    %133 = vector.broadcast %cst_31 : f32 to vector<8x32xf32>
    %134 = arith.subf %133, %127 : vector<8x32xf32>
    %135 = arith.mulf %134, %132 : vector<8x32xf32>
    %136 = arith.mulf %127, %88 : vector<8x32xf32>
    %137 = arith.addf %135, %136 : vector<8x32xf32>
    %cst_32 = arith.constant dense<0.000000e+00> : vector<8x16xf32>
    %138 = tpu.matmul %137, %3, %cst_32 {dimension_numbers = #tpu.dot_dimension_numbers<[1], [0], [0], [1], [0, 0, 1, 1], [], []>} : vector<8x32xf32>, vector<32x16xf32>, vector<8x16xf32> -> vector<8x16xf32>
    %139 = vector.broadcast %4 : vector<1x16xf32> to vector<8x16xf32>
    %140 = arith.addf %138, %139 : vector<8x16xf32>
    %141 = arith.index_cast %c2_i32 : i32 to index
    %c0_33 = arith.constant 0 : index
    %c0_34 = arith.constant 0 : index
    %142 = vector.load %arg5[%141, %c0_33, %c0_34] : memref<10x8x16xf32, #tpu.memory_space<vmem>>, vector<1x8x16xf32>
    %143 = vector.shape_cast %142 : vector<1x8x16xf32> to vector<8x16xf32>
    %144 = vector.shape_cast %140 : vector<8x16xf32> to vector<1x8x16xf32>
    tpu.vector_store %arg5[%141, %c0_33, %c0_34], %144 {strides = array<i32>} : memref<10x8x16xf32, #tpu.memory_space<vmem>>, vector<1x8x16xf32>,
    %cst_35 = arith.constant dense<0xFF800000> : vector<8xf32>
    %145 = vector.multi_reduction <maximumf>, %140, %cst_35 [1] : vector<8x16xf32> to vector<8xf32>
    %146 = vector.shape_cast %145 : vector<8xf32> to vector<8x1xf32>
    %147 = vector.broadcast %146 : vector<8x1xf32> to vector<8x16xf32>
    %148 = arith.cmpf oeq, %140, %147 : vector<8x16xf32>
    %c16_i32_36 = arith.constant 16 : i32
    %149 = vector.broadcast %c16_i32_36 : i32 to vector<8x16xi32>
    %150 = arith.select %148, %0, %149 : vector<8x16xi1>, vector<8x16xi32>
    %cst_37 = arith.constant dense<2147483647> : vector<8xi32>
    %151 = vector.multi_reduction <minsi>, %150, %cst_37 [1] : vector<8x16xi32> to vector<8xi32>
    %152 = vector.shape_cast %151 : vector<8xi32> to vector<8x1xi32>
    %153 = vector.broadcast %152 : vector<8x1xi32> to vector<8x16xi32>
    %154 = arith.cmpi eq, %0, %153 : vector<8x16xi32>
    %155 = arith.extui %154 : vector<8x16xi1> to vector<8x16xi32>
    %156 = arith.sitofp %155 : vector<8x16xi32> to vector<8x16xf32>
    %c3_i32 = arith.constant 3 : i32
    %157 = tpu.concatenate %156, %137 in 1 : vector<8x16xf32>, vector<8x32xf32> -> vector<8x48xf32>
    %cst_38 = arith.constant dense<0.000000e+00> : vector<8x192xf32>
    %158 = tpu.matmul %157, %1, %cst_38 {dimension_numbers = #tpu.dot_dimension_numbers<[1], [0], [0], [1], [0, 0, 1, 1], [], []>} : vector<8x48xf32>, vector<48x192xf32>, vector<8x192xf32> -> vector<8x192xf32>
    %159 = vector.broadcast %2 : vector<1x192xf32> to vector<8x192xf32>
    %160 = arith.addf %158, %159 : vector<8x192xf32>
    %161 = vector.extract_strided_slice %160 {offsets = [0, 0], sizes = [8, 32], strides = [1, 1]} : vector<8x192xf32> to vector<8x32xf32>
    %162 = vector.extract_strided_slice %160 {offsets = [0, 96], sizes = [8, 32], strides = [1, 1]} : vector<8x192xf32> to vector<8x32xf32>
    %163 = arith.addf %161, %162 : vector<8x32xf32>
    %164 = arith.negf %163 : vector<8x32xf32>
    %165 = math.exp %164 : vector<8x32xf32>
    %cst_39 = arith.constant 1.000000e+00 : f32
    %166 = vector.broadcast %cst_39 : f32 to vector<8x32xf32>
    %167 = arith.addf %166, %165 : vector<8x32xf32>
    %168 = arith.divf %166, %167 : vector<8x32xf32>
    %169 = vector.extract_strided_slice %160 {offsets = [0, 32], sizes = [8, 32], strides = [1, 1]} : vector<8x192xf32> to vector<8x32xf32>
    %170 = vector.extract_strided_slice %160 {offsets = [0, 128], sizes = [8, 32], strides = [1, 1]} : vector<8x192xf32> to vector<8x32xf32>
    %171 = arith.addf %169, %170 : vector<8x32xf32>
    %172 = arith.negf %171 : vector<8x32xf32>
    %173 = math.exp %172 : vector<8x32xf32>
    %cst_40 = arith.constant 1.000000e+00 : f32
    %174 = vector.broadcast %cst_40 : f32 to vector<8x32xf32>
    %175 = arith.addf %174, %173 : vector<8x32xf32>
    %176 = arith.divf %174, %175 : vector<8x32xf32>
    %177 = vector.extract_strided_slice %160 {offsets = [0, 64], sizes = [8, 32], strides = [1, 1]} : vector<8x192xf32> to vector<8x32xf32>
    %178 = vector.extract_strided_slice %160 {offsets = [0, 160], sizes = [8, 32], strides = [1, 1]} : vector<8x192xf32> to vector<8x32xf32>
    %179 = arith.mulf %168, %178 : vector<8x32xf32>
    %180 = arith.addf %177, %179 : vector<8x32xf32>
    %181 = math.tanh %180 : vector<8x32xf32>
    %cst_41 = arith.constant 1.000000e+00 : f32
    %182 = vector.broadcast %cst_41 : f32 to vector<8x32xf32>
    %183 = arith.subf %182, %176 : vector<8x32xf32>
    %184 = arith.mulf %183, %181 : vector<8x32xf32>
    %185 = arith.mulf %176, %137 : vector<8x32xf32>
    %186 = arith.addf %184, %185 : vector<8x32xf32>
    %cst_42 = arith.constant dense<0.000000e+00> : vector<8x16xf32>
    %187 = tpu.matmul %186, %3, %cst_42 {dimension_numbers = #tpu.dot_dimension_numbers<[1], [0], [0], [1], [0, 0, 1, 1], [], []>} : vector<8x32xf32>, vector<32x16xf32>, vector<8x16xf32> -> vector<8x16xf32>
    %188 = vector.broadcast %4 : vector<1x16xf32> to vector<8x16xf32>
    %189 = arith.addf %187, %188 : vector<8x16xf32>
    %190 = arith.index_cast %c3_i32 : i32 to index
    %c0_43 = arith.constant 0 : index
    %c0_44 = arith.constant 0 : index
    %191 = vector.load %arg5[%190, %c0_43, %c0_44] : memref<10x8x16xf32, #tpu.memory_space<vmem>>, vector<1x8x16xf32>
    %192 = vector.shape_cast %191 : vector<1x8x16xf32> to vector<8x16xf32>
    %193 = vector.shape_cast %189 : vector<8x16xf32> to vector<1x8x16xf32>
    tpu.vector_store %arg5[%190, %c0_43, %c0_44], %193 {strides = array<i32>} : memref<10x8x16xf32, #tpu.memory_space<vmem>>, vector<1x8x16xf32>,
    %cst_45 = arith.constant dense<0xFF800000> : vector<8xf32>
    %194 = vector.multi_reduction <maximumf>, %189, %cst_45 [1] : vector<8x16xf32> to vector<8xf32>
    %195 = vector.shape_cast %194 : vector<8xf32> to vector<8x1xf32>
    %196 = vector.broadcast %195 : vector<8x1xf32> to vector<8x16xf32>
    %197 = arith.cmpf oeq, %189, %196 : vector<8x16xf32>
    %c16_i32_46 = arith.constant 16 : i32
    %198 = vector.broadcast %c16_i32_46 : i32 to vector<8x16xi32>
    %199 = arith.select %197, %0, %198 : vector<8x16xi1>, vector<8x16xi32>
    %cst_47 = arith.constant dense<2147483647> : vector<8xi32>
    %200 = vector.multi_reduction <minsi>, %199, %cst_47 [1] : vector<8x16xi32> to vector<8xi32>
    %201 = vector.shape_cast %200 : vector<8xi32> to vector<8x1xi32>
    %202 = vector.broadcast %201 : vector<8x1xi32> to vector<8x16xi32>
    %203 = arith.cmpi eq, %0, %202 : vector<8x16xi32>
    %204 = arith.extui %203 : vector<8x16xi1> to vector<8x16xi32>
    %205 = arith.sitofp %204 : vector<8x16xi32> to vector<8x16xf32>
    %c4_i32 = arith.constant 4 : i32
    %206 = tpu.concatenate %205, %186 in 1 : vector<8x16xf32>, vector<8x32xf32> -> vector<8x48xf32>
    %cst_48 = arith.constant dense<0.000000e+00> : vector<8x192xf32>
    %207 = tpu.matmul %206, %1, %cst_48 {dimension_numbers = #tpu.dot_dimension_numbers<[1], [0], [0], [1], [0, 0, 1, 1], [], []>} : vector<8x48xf32>, vector<48x192xf32>, vector<8x192xf32> -> vector<8x192xf32>
    %208 = vector.broadcast %2 : vector<1x192xf32> to vector<8x192xf32>
    %209 = arith.addf %207, %208 : vector<8x192xf32>
    %210 = vector.extract_strided_slice %209 {offsets = [0, 0], sizes = [8, 32], strides = [1, 1]} : vector<8x192xf32> to vector<8x32xf32>
    %211 = vector.extract_strided_slice %209 {offsets = [0, 96], sizes = [8, 32], strides = [1, 1]} : vector<8x192xf32> to vector<8x32xf32>
    %212 = arith.addf %210, %211 : vector<8x32xf32>
    %213 = arith.negf %212 : vector<8x32xf32>
    %214 = math.exp %213 : vector<8x32xf32>
    %cst_49 = arith.constant 1.000000e+00 : f32
    %215 = vector.broadcast %cst_49 : f32 to vector<8x32xf32>
    %216 = arith.addf %215, %214 : vector<8x32xf32>
    %217 = arith.divf %215, %216 : vector<8x32xf32>
    %218 = vector.extract_strided_slice %209 {offsets = [0, 32], sizes = [8, 32], strides = [1, 1]} : vector<8x192xf32> to vector<8x32xf32>
    %219 = vector.extract_strided_slice %209 {offsets = [0, 128], sizes = [8, 32], strides = [1, 1]} : vector<8x192xf32> to vector<8x32xf32>
    %220 = arith.addf %218, %219 : vector<8x32xf32>
    %221 = arith.negf %220 : vector<8x32xf32>
    %222 = math.exp %221 : vector<8x32xf32>
    %cst_50 = arith.constant 1.000000e+00 : f32
    %223 = vector.broadcast %cst_50 : f32 to vector<8x32xf32>
    %224 = arith.addf %223, %222 : vector<8x32xf32>
    %225 = arith.divf %223, %224 : vector<8x32xf32>
    %226 = vector.extract_strided_slice %209 {offsets = [0, 64], sizes = [8, 32], strides = [1, 1]} : vector<8x192xf32> to vector<8x32xf32>
    %227 = vector.extract_strided_slice %209 {offsets = [0, 160], sizes = [8, 32], strides = [1, 1]} : vector<8x192xf32> to vector<8x32xf32>
    %228 = arith.mulf %217, %227 : vector<8x32xf32>
    %229 = arith.addf %226, %228 : vector<8x32xf32>
    %230 = math.tanh %229 : vector<8x32xf32>
    %cst_51 = arith.constant 1.000000e+00 : f32
    %231 = vector.broadcast %cst_51 : f32 to vector<8x32xf32>
    %232 = arith.subf %231, %225 : vector<8x32xf32>
    %233 = arith.mulf %232, %230 : vector<8x32xf32>
    %234 = arith.mulf %225, %186 : vector<8x32xf32>
    %235 = arith.addf %233, %234 : vector<8x32xf32>
    %cst_52 = arith.constant dense<0.000000e+00> : vector<8x16xf32>
    %236 = tpu.matmul %235, %3, %cst_52 {dimension_numbers = #tpu.dot_dimension_numbers<[1], [0], [0], [1], [0, 0, 1, 1], [], []>} : vector<8x32xf32>, vector<32x16xf32>, vector<8x16xf32> -> vector<8x16xf32>
    %237 = vector.broadcast %4 : vector<1x16xf32> to vector<8x16xf32>
    %238 = arith.addf %236, %237 : vector<8x16xf32>
    %239 = arith.index_cast %c4_i32 : i32 to index
    %c0_53 = arith.constant 0 : index
    %c0_54 = arith.constant 0 : index
    %240 = vector.load %arg5[%239, %c0_53, %c0_54] : memref<10x8x16xf32, #tpu.memory_space<vmem>>, vector<1x8x16xf32>
    %241 = vector.shape_cast %240 : vector<1x8x16xf32> to vector<8x16xf32>
    %242 = vector.shape_cast %238 : vector<8x16xf32> to vector<1x8x16xf32>
    tpu.vector_store %arg5[%239, %c0_53, %c0_54], %242 {strides = array<i32>} : memref<10x8x16xf32, #tpu.memory_space<vmem>>, vector<1x8x16xf32>,
    %cst_55 = arith.constant dense<0xFF800000> : vector<8xf32>
    %243 = vector.multi_reduction <maximumf>, %238, %cst_55 [1] : vector<8x16xf32> to vector<8xf32>
    %244 = vector.shape_cast %243 : vector<8xf32> to vector<8x1xf32>
    %245 = vector.broadcast %244 : vector<8x1xf32> to vector<8x16xf32>
    %246 = arith.cmpf oeq, %238, %245 : vector<8x16xf32>
    %c16_i32_56 = arith.constant 16 : i32
    %247 = vector.broadcast %c16_i32_56 : i32 to vector<8x16xi32>
    %248 = arith.select %246, %0, %247 : vector<8x16xi1>, vector<8x16xi32>
    %cst_57 = arith.constant dense<2147483647> : vector<8xi32>
    %249 = vector.multi_reduction <minsi>, %248, %cst_57 [1] : vector<8x16xi32> to vector<8xi32>
    %250 = vector.shape_cast %249 : vector<8xi32> to vector<8x1xi32>
    %251 = vector.broadcast %250 : vector<8x1xi32> to vector<8x16xi32>
    %252 = arith.cmpi eq, %0, %251 : vector<8x16xi32>
    %253 = arith.extui %252 : vector<8x16xi1> to vector<8x16xi32>
    %254 = arith.sitofp %253 : vector<8x16xi32> to vector<8x16xf32>
    %c5_i32 = arith.constant 5 : i32
    %255 = tpu.concatenate %254, %235 in 1 : vector<8x16xf32>, vector<8x32xf32> -> vector<8x48xf32>
    %cst_58 = arith.constant dense<0.000000e+00> : vector<8x192xf32>
    %256 = tpu.matmul %255, %1, %cst_58 {dimension_numbers = #tpu.dot_dimension_numbers<[1], [0], [0], [1], [0, 0, 1, 1], [], []>} : vector<8x48xf32>, vector<48x192xf32>, vector<8x192xf32> -> vector<8x192xf32>
    %257 = vector.broadcast %2 : vector<1x192xf32> to vector<8x192xf32>
    %258 = arith.addf %256, %257 : vector<8x192xf32>
    %259 = vector.extract_strided_slice %258 {offsets = [0, 0], sizes = [8, 32], strides = [1, 1]} : vector<8x192xf32> to vector<8x32xf32>
    %260 = vector.extract_strided_slice %258 {offsets = [0, 96], sizes = [8, 32], strides = [1, 1]} : vector<8x192xf32> to vector<8x32xf32>
    %261 = arith.addf %259, %260 : vector<8x32xf32>
    %262 = arith.negf %261 : vector<8x32xf32>
    %263 = math.exp %262 : vector<8x32xf32>
    %cst_59 = arith.constant 1.000000e+00 : f32
    %264 = vector.broadcast %cst_59 : f32 to vector<8x32xf32>
    %265 = arith.addf %264, %263 : vector<8x32xf32>
    %266 = arith.divf %264, %265 : vector<8x32xf32>
    %267 = vector.extract_strided_slice %258 {offsets = [0, 32], sizes = [8, 32], strides = [1, 1]} : vector<8x192xf32> to vector<8x32xf32>
    %268 = vector.extract_strided_slice %258 {offsets = [0, 128], sizes = [8, 32], strides = [1, 1]} : vector<8x192xf32> to vector<8x32xf32>
    %269 = arith.addf %267, %268 : vector<8x32xf32>
    %270 = arith.negf %269 : vector<8x32xf32>
    %271 = math.exp %270 : vector<8x32xf32>
    %cst_60 = arith.constant 1.000000e+00 : f32
    %272 = vector.broadcast %cst_60 : f32 to vector<8x32xf32>
    %273 = arith.addf %272, %271 : vector<8x32xf32>
    %274 = arith.divf %272, %273 : vector<8x32xf32>
    %275 = vector.extract_strided_slice %258 {offsets = [0, 64], sizes = [8, 32], strides = [1, 1]} : vector<8x192xf32> to vector<8x32xf32>
    %276 = vector.extract_strided_slice %258 {offsets = [0, 160], sizes = [8, 32], strides = [1, 1]} : vector<8x192xf32> to vector<8x32xf32>
    %277 = arith.mulf %266, %276 : vector<8x32xf32>
    %278 = arith.addf %275, %277 : vector<8x32xf32>
    %279 = math.tanh %278 : vector<8x32xf32>
    %cst_61 = arith.constant 1.000000e+00 : f32
    %280 = vector.broadcast %cst_61 : f32 to vector<8x32xf32>
    %281 = arith.subf %280, %274 : vector<8x32xf32>
    %282 = arith.mulf %281, %279 : vector<8x32xf32>
    %283 = arith.mulf %274, %235 : vector<8x32xf32>
    %284 = arith.addf %282, %283 : vector<8x32xf32>
    %cst_62 = arith.constant dense<0.000000e+00> : vector<8x16xf32>
    %285 = tpu.matmul %284, %3, %cst_62 {dimension_numbers = #tpu.dot_dimension_numbers<[1], [0], [0], [1], [0, 0, 1, 1], [], []>} : vector<8x32xf32>, vector<32x16xf32>, vector<8x16xf32> -> vector<8x16xf32>
    %286 = vector.broadcast %4 : vector<1x16xf32> to vector<8x16xf32>
    %287 = arith.addf %285, %286 : vector<8x16xf32>
    %288 = arith.index_cast %c5_i32 : i32 to index
    %c0_63 = arith.constant 0 : index
    %c0_64 = arith.constant 0 : index
    %289 = vector.load %arg5[%288, %c0_63, %c0_64] : memref<10x8x16xf32, #tpu.memory_space<vmem>>, vector<1x8x16xf32>
    %290 = vector.shape_cast %289 : vector<1x8x16xf32> to vector<8x16xf32>
    %291 = vector.shape_cast %287 : vector<8x16xf32> to vector<1x8x16xf32>
    tpu.vector_store %arg5[%288, %c0_63, %c0_64], %291 {strides = array<i32>} : memref<10x8x16xf32, #tpu.memory_space<vmem>>, vector<1x8x16xf32>,
    %cst_65 = arith.constant dense<0xFF800000> : vector<8xf32>
    %292 = vector.multi_reduction <maximumf>, %287, %cst_65 [1] : vector<8x16xf32> to vector<8xf32>
    %293 = vector.shape_cast %292 : vector<8xf32> to vector<8x1xf32>
    %294 = vector.broadcast %293 : vector<8x1xf32> to vector<8x16xf32>
    %295 = arith.cmpf oeq, %287, %294 : vector<8x16xf32>
    %c16_i32_66 = arith.constant 16 : i32
    %296 = vector.broadcast %c16_i32_66 : i32 to vector<8x16xi32>
    %297 = arith.select %295, %0, %296 : vector<8x16xi1>, vector<8x16xi32>
    %cst_67 = arith.constant dense<2147483647> : vector<8xi32>
    %298 = vector.multi_reduction <minsi>, %297, %cst_67 [1] : vector<8x16xi32> to vector<8xi32>
    %299 = vector.shape_cast %298 : vector<8xi32> to vector<8x1xi32>
    %300 = vector.broadcast %299 : vector<8x1xi32> to vector<8x16xi32>
    %301 = arith.cmpi eq, %0, %300 : vector<8x16xi32>
    %302 = arith.extui %301 : vector<8x16xi1> to vector<8x16xi32>
    %303 = arith.sitofp %302 : vector<8x16xi32> to vector<8x16xf32>
    %c6_i32 = arith.constant 6 : i32
    %304 = tpu.concatenate %303, %284 in 1 : vector<8x16xf32>, vector<8x32xf32> -> vector<8x48xf32>
    %cst_68 = arith.constant dense<0.000000e+00> : vector<8x192xf32>
    %305 = tpu.matmul %304, %1, %cst_68 {dimension_numbers = #tpu.dot_dimension_numbers<[1], [0], [0], [1], [0, 0, 1, 1], [], []>} : vector<8x48xf32>, vector<48x192xf32>, vector<8x192xf32> -> vector<8x192xf32>
    %306 = vector.broadcast %2 : vector<1x192xf32> to vector<8x192xf32>
    %307 = arith.addf %305, %306 : vector<8x192xf32>
    %308 = vector.extract_strided_slice %307 {offsets = [0, 0], sizes = [8, 32], strides = [1, 1]} : vector<8x192xf32> to vector<8x32xf32>
    %309 = vector.extract_strided_slice %307 {offsets = [0, 96], sizes = [8, 32], strides = [1, 1]} : vector<8x192xf32> to vector<8x32xf32>
    %310 = arith.addf %308, %309 : vector<8x32xf32>
    %311 = arith.negf %310 : vector<8x32xf32>
    %312 = math.exp %311 : vector<8x32xf32>
    %cst_69 = arith.constant 1.000000e+00 : f32
    %313 = vector.broadcast %cst_69 : f32 to vector<8x32xf32>
    %314 = arith.addf %313, %312 : vector<8x32xf32>
    %315 = arith.divf %313, %314 : vector<8x32xf32>
    %316 = vector.extract_strided_slice %307 {offsets = [0, 32], sizes = [8, 32], strides = [1, 1]} : vector<8x192xf32> to vector<8x32xf32>
    %317 = vector.extract_strided_slice %307 {offsets = [0, 128], sizes = [8, 32], strides = [1, 1]} : vector<8x192xf32> to vector<8x32xf32>
    %318 = arith.addf %316, %317 : vector<8x32xf32>
    %319 = arith.negf %318 : vector<8x32xf32>
    %320 = math.exp %319 : vector<8x32xf32>
    %cst_70 = arith.constant 1.000000e+00 : f32
    %321 = vector.broadcast %cst_70 : f32 to vector<8x32xf32>
    %322 = arith.addf %321, %320 : vector<8x32xf32>
    %323 = arith.divf %321, %322 : vector<8x32xf32>
    %324 = vector.extract_strided_slice %307 {offsets = [0, 64], sizes = [8, 32], strides = [1, 1]} : vector<8x192xf32> to vector<8x32xf32>
    %325 = vector.extract_strided_slice %307 {offsets = [0, 160], sizes = [8, 32], strides = [1, 1]} : vector<8x192xf32> to vector<8x32xf32>
    %326 = arith.mulf %315, %325 : vector<8x32xf32>
    %327 = arith.addf %324, %326 : vector<8x32xf32>
    %328 = math.tanh %327 : vector<8x32xf32>
    %cst_71 = arith.constant 1.000000e+00 : f32
    %329 = vector.broadcast %cst_71 : f32 to vector<8x32xf32>
    %330 = arith.subf %329, %323 : vector<8x32xf32>
    %331 = arith.mulf %330, %328 : vector<8x32xf32>
    %332 = arith.mulf %323, %284 : vector<8x32xf32>
    %333 = arith.addf %331, %332 : vector<8x32xf32>
    %cst_72 = arith.constant dense<0.000000e+00> : vector<8x16xf32>
    %334 = tpu.matmul %333, %3, %cst_72 {dimension_numbers = #tpu.dot_dimension_numbers<[1], [0], [0], [1], [0, 0, 1, 1], [], []>} : vector<8x32xf32>, vector<32x16xf32>, vector<8x16xf32> -> vector<8x16xf32>
    %335 = vector.broadcast %4 : vector<1x16xf32> to vector<8x16xf32>
    %336 = arith.addf %334, %335 : vector<8x16xf32>
    %337 = arith.index_cast %c6_i32 : i32 to index
    %c0_73 = arith.constant 0 : index
    %c0_74 = arith.constant 0 : index
    %338 = vector.load %arg5[%337, %c0_73, %c0_74] : memref<10x8x16xf32, #tpu.memory_space<vmem>>, vector<1x8x16xf32>
    %339 = vector.shape_cast %338 : vector<1x8x16xf32> to vector<8x16xf32>
    %340 = vector.shape_cast %336 : vector<8x16xf32> to vector<1x8x16xf32>
    tpu.vector_store %arg5[%337, %c0_73, %c0_74], %340 {strides = array<i32>} : memref<10x8x16xf32, #tpu.memory_space<vmem>>, vector<1x8x16xf32>,
    %cst_75 = arith.constant dense<0xFF800000> : vector<8xf32>
    %341 = vector.multi_reduction <maximumf>, %336, %cst_75 [1] : vector<8x16xf32> to vector<8xf32>
    %342 = vector.shape_cast %341 : vector<8xf32> to vector<8x1xf32>
    %343 = vector.broadcast %342 : vector<8x1xf32> to vector<8x16xf32>
    %344 = arith.cmpf oeq, %336, %343 : vector<8x16xf32>
    %c16_i32_76 = arith.constant 16 : i32
    %345 = vector.broadcast %c16_i32_76 : i32 to vector<8x16xi32>
    %346 = arith.select %344, %0, %345 : vector<8x16xi1>, vector<8x16xi32>
    %cst_77 = arith.constant dense<2147483647> : vector<8xi32>
    %347 = vector.multi_reduction <minsi>, %346, %cst_77 [1] : vector<8x16xi32> to vector<8xi32>
    %348 = vector.shape_cast %347 : vector<8xi32> to vector<8x1xi32>
    %349 = vector.broadcast %348 : vector<8x1xi32> to vector<8x16xi32>
    %350 = arith.cmpi eq, %0, %349 : vector<8x16xi32>
    %351 = arith.extui %350 : vector<8x16xi1> to vector<8x16xi32>
    %352 = arith.sitofp %351 : vector<8x16xi32> to vector<8x16xf32>
    %c7_i32 = arith.constant 7 : i32
    %353 = tpu.concatenate %352, %333 in 1 : vector<8x16xf32>, vector<8x32xf32> -> vector<8x48xf32>
    %cst_78 = arith.constant dense<0.000000e+00> : vector<8x192xf32>
    %354 = tpu.matmul %353, %1, %cst_78 {dimension_numbers = #tpu.dot_dimension_numbers<[1], [0], [0], [1], [0, 0, 1, 1], [], []>} : vector<8x48xf32>, vector<48x192xf32>, vector<8x192xf32> -> vector<8x192xf32>
    %355 = vector.broadcast %2 : vector<1x192xf32> to vector<8x192xf32>
    %356 = arith.addf %354, %355 : vector<8x192xf32>
    %357 = vector.extract_strided_slice %356 {offsets = [0, 0], sizes = [8, 32], strides = [1, 1]} : vector<8x192xf32> to vector<8x32xf32>
    %358 = vector.extract_strided_slice %356 {offsets = [0, 96], sizes = [8, 32], strides = [1, 1]} : vector<8x192xf32> to vector<8x32xf32>
    %359 = arith.addf %357, %358 : vector<8x32xf32>
    %360 = arith.negf %359 : vector<8x32xf32>
    %361 = math.exp %360 : vector<8x32xf32>
    %cst_79 = arith.constant 1.000000e+00 : f32
    %362 = vector.broadcast %cst_79 : f32 to vector<8x32xf32>
    %363 = arith.addf %362, %361 : vector<8x32xf32>
    %364 = arith.divf %362, %363 : vector<8x32xf32>
    %365 = vector.extract_strided_slice %356 {offsets = [0, 32], sizes = [8, 32], strides = [1, 1]} : vector<8x192xf32> to vector<8x32xf32>
    %366 = vector.extract_strided_slice %356 {offsets = [0, 128], sizes = [8, 32], strides = [1, 1]} : vector<8x192xf32> to vector<8x32xf32>
    %367 = arith.addf %365, %366 : vector<8x32xf32>
    %368 = arith.negf %367 : vector<8x32xf32>
    %369 = math.exp %368 : vector<8x32xf32>
    %cst_80 = arith.constant 1.000000e+00 : f32
    %370 = vector.broadcast %cst_80 : f32 to vector<8x32xf32>
    %371 = arith.addf %370, %369 : vector<8x32xf32>
    %372 = arith.divf %370, %371 : vector<8x32xf32>
    %373 = vector.extract_strided_slice %356 {offsets = [0, 64], sizes = [8, 32], strides = [1, 1]} : vector<8x192xf32> to vector<8x32xf32>
    %374 = vector.extract_strided_slice %356 {offsets = [0, 160], sizes = [8, 32], strides = [1, 1]} : vector<8x192xf32> to vector<8x32xf32>
    %375 = arith.mulf %364, %374 : vector<8x32xf32>
    %376 = arith.addf %373, %375 : vector<8x32xf32>
    %377 = math.tanh %376 : vector<8x32xf32>
    %cst_81 = arith.constant 1.000000e+00 : f32
    %378 = vector.broadcast %cst_81 : f32 to vector<8x32xf32>
    %379 = arith.subf %378, %372 : vector<8x32xf32>
    %380 = arith.mulf %379, %377 : vector<8x32xf32>
    %381 = arith.mulf %372, %333 : vector<8x32xf32>
    %382 = arith.addf %380, %381 : vector<8x32xf32>
    %cst_82 = arith.constant dense<0.000000e+00> : vector<8x16xf32>
    %383 = tpu.matmul %382, %3, %cst_82 {dimension_numbers = #tpu.dot_dimension_numbers<[1], [0], [0], [1], [0, 0, 1, 1], [], []>} : vector<8x32xf32>, vector<32x16xf32>, vector<8x16xf32> -> vector<8x16xf32>
    %384 = vector.broadcast %4 : vector<1x16xf32> to vector<8x16xf32>
    %385 = arith.addf %383, %384 : vector<8x16xf32>
    %386 = arith.index_cast %c7_i32 : i32 to index
    %c0_83 = arith.constant 0 : index
    %c0_84 = arith.constant 0 : index
    %387 = vector.load %arg5[%386, %c0_83, %c0_84] : memref<10x8x16xf32, #tpu.memory_space<vmem>>, vector<1x8x16xf32>
    %388 = vector.shape_cast %387 : vector<1x8x16xf32> to vector<8x16xf32>
    %389 = vector.shape_cast %385 : vector<8x16xf32> to vector<1x8x16xf32>
    tpu.vector_store %arg5[%386, %c0_83, %c0_84], %389 {strides = array<i32>} : memref<10x8x16xf32, #tpu.memory_space<vmem>>, vector<1x8x16xf32>,
    %cst_85 = arith.constant dense<0xFF800000> : vector<8xf32>
    %390 = vector.multi_reduction <maximumf>, %385, %cst_85 [1] : vector<8x16xf32> to vector<8xf32>
    %391 = vector.shape_cast %390 : vector<8xf32> to vector<8x1xf32>
    %392 = vector.broadcast %391 : vector<8x1xf32> to vector<8x16xf32>
    %393 = arith.cmpf oeq, %385, %392 : vector<8x16xf32>
    %c16_i32_86 = arith.constant 16 : i32
    %394 = vector.broadcast %c16_i32_86 : i32 to vector<8x16xi32>
    %395 = arith.select %393, %0, %394 : vector<8x16xi1>, vector<8x16xi32>
    %cst_87 = arith.constant dense<2147483647> : vector<8xi32>
    %396 = vector.multi_reduction <minsi>, %395, %cst_87 [1] : vector<8x16xi32> to vector<8xi32>
    %397 = vector.shape_cast %396 : vector<8xi32> to vector<8x1xi32>
    %398 = vector.broadcast %397 : vector<8x1xi32> to vector<8x16xi32>
    %399 = arith.cmpi eq, %0, %398 : vector<8x16xi32>
    %400 = arith.extui %399 : vector<8x16xi1> to vector<8x16xi32>
    %401 = arith.sitofp %400 : vector<8x16xi32> to vector<8x16xf32>
    %c8_i32 = arith.constant 8 : i32
    %402 = tpu.concatenate %401, %382 in 1 : vector<8x16xf32>, vector<8x32xf32> -> vector<8x48xf32>
    %cst_88 = arith.constant dense<0.000000e+00> : vector<8x192xf32>
    %403 = tpu.matmul %402, %1, %cst_88 {dimension_numbers = #tpu.dot_dimension_numbers<[1], [0], [0], [1], [0, 0, 1, 1], [], []>} : vector<8x48xf32>, vector<48x192xf32>, vector<8x192xf32> -> vector<8x192xf32>
    %404 = vector.broadcast %2 : vector<1x192xf32> to vector<8x192xf32>
    %405 = arith.addf %403, %404 : vector<8x192xf32>
    %406 = vector.extract_strided_slice %405 {offsets = [0, 0], sizes = [8, 32], strides = [1, 1]} : vector<8x192xf32> to vector<8x32xf32>
    %407 = vector.extract_strided_slice %405 {offsets = [0, 96], sizes = [8, 32], strides = [1, 1]} : vector<8x192xf32> to vector<8x32xf32>
    %408 = arith.addf %406, %407 : vector<8x32xf32>
    %409 = arith.negf %408 : vector<8x32xf32>
    %410 = math.exp %409 : vector<8x32xf32>
    %cst_89 = arith.constant 1.000000e+00 : f32
    %411 = vector.broadcast %cst_89 : f32 to vector<8x32xf32>
    %412 = arith.addf %411, %410 : vector<8x32xf32>
    %413 = arith.divf %411, %412 : vector<8x32xf32>
    %414 = vector.extract_strided_slice %405 {offsets = [0, 32], sizes = [8, 32], strides = [1, 1]} : vector<8x192xf32> to vector<8x32xf32>
    %415 = vector.extract_strided_slice %405 {offsets = [0, 128], sizes = [8, 32], strides = [1, 1]} : vector<8x192xf32> to vector<8x32xf32>
    %416 = arith.addf %414, %415 : vector<8x32xf32>
    %417 = arith.negf %416 : vector<8x32xf32>
    %418 = math.exp %417 : vector<8x32xf32>
    %cst_90 = arith.constant 1.000000e+00 : f32
    %419 = vector.broadcast %cst_90 : f32 to vector<8x32xf32>
    %420 = arith.addf %419, %418 : vector<8x32xf32>
    %421 = arith.divf %419, %420 : vector<8x32xf32>
    %422 = vector.extract_strided_slice %405 {offsets = [0, 64], sizes = [8, 32], strides = [1, 1]} : vector<8x192xf32> to vector<8x32xf32>
    %423 = vector.extract_strided_slice %405 {offsets = [0, 160], sizes = [8, 32], strides = [1, 1]} : vector<8x192xf32> to vector<8x32xf32>
    %424 = arith.mulf %413, %423 : vector<8x32xf32>
    %425 = arith.addf %422, %424 : vector<8x32xf32>
    %426 = math.tanh %425 : vector<8x32xf32>
    %cst_91 = arith.constant 1.000000e+00 : f32
    %427 = vector.broadcast %cst_91 : f32 to vector<8x32xf32>
    %428 = arith.subf %427, %421 : vector<8x32xf32>
    %429 = arith.mulf %428, %426 : vector<8x32xf32>
    %430 = arith.mulf %421, %382 : vector<8x32xf32>
    %431 = arith.addf %429, %430 : vector<8x32xf32>
    %cst_92 = arith.constant dense<0.000000e+00> : vector<8x16xf32>
    %432 = tpu.matmul %431, %3, %cst_92 {dimension_numbers = #tpu.dot_dimension_numbers<[1], [0], [0], [1], [0, 0, 1, 1], [], []>} : vector<8x32xf32>, vector<32x16xf32>, vector<8x16xf32> -> vector<8x16xf32>
    %433 = vector.broadcast %4 : vector<1x16xf32> to vector<8x16xf32>
    %434 = arith.addf %432, %433 : vector<8x16xf32>
    %435 = arith.index_cast %c8_i32 : i32 to index
    %c0_93 = arith.constant 0 : index
    %c0_94 = arith.constant 0 : index
    %436 = vector.load %arg5[%435, %c0_93, %c0_94] : memref<10x8x16xf32, #tpu.memory_space<vmem>>, vector<1x8x16xf32>
    %437 = vector.shape_cast %436 : vector<1x8x16xf32> to vector<8x16xf32>
    %438 = vector.shape_cast %434 : vector<8x16xf32> to vector<1x8x16xf32>
    tpu.vector_store %arg5[%435, %c0_93, %c0_94], %438 {strides = array<i32>} : memref<10x8x16xf32, #tpu.memory_space<vmem>>, vector<1x8x16xf32>,
    %cst_95 = arith.constant dense<0xFF800000> : vector<8xf32>
    %439 = vector.multi_reduction <maximumf>, %434, %cst_95 [1] : vector<8x16xf32> to vector<8xf32>
    %440 = vector.shape_cast %439 : vector<8xf32> to vector<8x1xf32>
    %441 = vector.broadcast %440 : vector<8x1xf32> to vector<8x16xf32>
    %442 = arith.cmpf oeq, %434, %441 : vector<8x16xf32>
    %c16_i32_96 = arith.constant 16 : i32
    %443 = vector.broadcast %c16_i32_96 : i32 to vector<8x16xi32>
    %444 = arith.select %442, %0, %443 : vector<8x16xi1>, vector<8x16xi32>
    %cst_97 = arith.constant dense<2147483647> : vector<8xi32>
    %445 = vector.multi_reduction <minsi>, %444, %cst_97 [1] : vector<8x16xi32> to vector<8xi32>
    %446 = vector.shape_cast %445 : vector<8xi32> to vector<8x1xi32>
    %447 = vector.broadcast %446 : vector<8x1xi32> to vector<8x16xi32>
    %448 = arith.cmpi eq, %0, %447 : vector<8x16xi32>
    %449 = arith.extui %448 : vector<8x16xi1> to vector<8x16xi32>
    %450 = arith.sitofp %449 : vector<8x16xi32> to vector<8x16xf32>
    %c9_i32 = arith.constant 9 : i32
    %451 = tpu.concatenate %450, %431 in 1 : vector<8x16xf32>, vector<8x32xf32> -> vector<8x48xf32>
    %cst_98 = arith.constant dense<0.000000e+00> : vector<8x192xf32>
    %452 = tpu.matmul %451, %1, %cst_98 {dimension_numbers = #tpu.dot_dimension_numbers<[1], [0], [0], [1], [0, 0, 1, 1], [], []>} : vector<8x48xf32>, vector<48x192xf32>, vector<8x192xf32> -> vector<8x192xf32>
    %453 = vector.broadcast %2 : vector<1x192xf32> to vector<8x192xf32>
    %454 = arith.addf %452, %453 : vector<8x192xf32>
    %455 = vector.extract_strided_slice %454 {offsets = [0, 0], sizes = [8, 32], strides = [1, 1]} : vector<8x192xf32> to vector<8x32xf32>
    %456 = vector.extract_strided_slice %454 {offsets = [0, 96], sizes = [8, 32], strides = [1, 1]} : vector<8x192xf32> to vector<8x32xf32>
    %457 = arith.addf %455, %456 : vector<8x32xf32>
    %458 = arith.negf %457 : vector<8x32xf32>
    %459 = math.exp %458 : vector<8x32xf32>
    %cst_99 = arith.constant 1.000000e+00 : f32
    %460 = vector.broadcast %cst_99 : f32 to vector<8x32xf32>
    %461 = arith.addf %460, %459 : vector<8x32xf32>
    %462 = arith.divf %460, %461 : vector<8x32xf32>
    %463 = vector.extract_strided_slice %454 {offsets = [0, 32], sizes = [8, 32], strides = [1, 1]} : vector<8x192xf32> to vector<8x32xf32>
    %464 = vector.extract_strided_slice %454 {offsets = [0, 128], sizes = [8, 32], strides = [1, 1]} : vector<8x192xf32> to vector<8x32xf32>
    %465 = arith.addf %463, %464 : vector<8x32xf32>
    %466 = arith.negf %465 : vector<8x32xf32>
    %467 = math.exp %466 : vector<8x32xf32>
    %cst_100 = arith.constant 1.000000e+00 : f32
    %468 = vector.broadcast %cst_100 : f32 to vector<8x32xf32>
    %469 = arith.addf %468, %467 : vector<8x32xf32>
    %470 = arith.divf %468, %469 : vector<8x32xf32>
    %471 = vector.extract_strided_slice %454 {offsets = [0, 64], sizes = [8, 32], strides = [1, 1]} : vector<8x192xf32> to vector<8x32xf32>
    %472 = vector.extract_strided_slice %454 {offsets = [0, 160], sizes = [8, 32], strides = [1, 1]} : vector<8x192xf32> to vector<8x32xf32>
    %473 = arith.mulf %462, %472 : vector<8x32xf32>
    %474 = arith.addf %471, %473 : vector<8x32xf32>
    %475 = math.tanh %474 : vector<8x32xf32>
    %cst_101 = arith.constant 1.000000e+00 : f32
    %476 = vector.broadcast %cst_101 : f32 to vector<8x32xf32>
    %477 = arith.subf %476, %470 : vector<8x32xf32>
    %478 = arith.mulf %477, %475 : vector<8x32xf32>
    %479 = arith.mulf %470, %431 : vector<8x32xf32>
    %480 = arith.addf %478, %479 : vector<8x32xf32>
    %cst_102 = arith.constant dense<0.000000e+00> : vector<8x16xf32>
    %481 = tpu.matmul %480, %3, %cst_102 {dimension_numbers = #tpu.dot_dimension_numbers<[1], [0], [0], [1], [0, 0, 1, 1], [], []>} : vector<8x32xf32>, vector<32x16xf32>, vector<8x16xf32> -> vector<8x16xf32>
    %482 = vector.broadcast %4 : vector<1x16xf32> to vector<8x16xf32>
    %483 = arith.addf %481, %482 : vector<8x16xf32>
    %484 = arith.index_cast %c9_i32 : i32 to index
    %c0_103 = arith.constant 0 : index
    %c0_104 = arith.constant 0 : index
    %485 = vector.load %arg5[%484, %c0_103, %c0_104] : memref<10x8x16xf32, #tpu.memory_space<vmem>>, vector<1x8x16xf32>
    %486 = vector.shape_cast %485 : vector<1x8x16xf32> to vector<8x16xf32>
    %487 = vector.shape_cast %483 : vector<8x16xf32> to vector<1x8x16xf32>
    tpu.vector_store %arg5[%484, %c0_103, %c0_104], %487 {strides = array<i32>} : memref<10x8x16xf32, #tpu.memory_space<vmem>>, vector<1x8x16xf32>,
    %cst_105 = arith.constant dense<0xFF800000> : vector<8xf32>
    %488 = vector.multi_reduction <maximumf>, %483, %cst_105 [1] : vector<8x16xf32> to vector<8xf32>
    %489 = vector.shape_cast %488 : vector<8xf32> to vector<8x1xf32>
    %490 = vector.broadcast %489 : vector<8x1xf32> to vector<8x16xf32>
    %491 = arith.cmpf oeq, %483, %490 : vector<8x16xf32>
    %c16_i32_106 = arith.constant 16 : i32
    %492 = vector.broadcast %c16_i32_106 : i32 to vector<8x16xi32>
    %493 = arith.select %491, %0, %492 : vector<8x16xi1>, vector<8x16xi32>
    %cst_107 = arith.constant dense<2147483647> : vector<8xi32>
    %494 = vector.multi_reduction <minsi>, %493, %cst_107 [1] : vector<8x16xi32> to vector<8xi32>
    %495 = vector.shape_cast %494 : vector<8xi32> to vector<8x1xi32>
    %496 = vector.broadcast %495 : vector<8x1xi32> to vector<8x16xi32>
    %497 = arith.cmpi eq, %0, %496 : vector<8x16xi32>
    %498 = arith.extui %497 : vector<8x16xi1> to vector<8x16xi32>
    %499 = arith.sitofp %498 : vector<8x16xi32> to vector<8x16xf32>
    %c10_i32 = arith.constant 10 : i32
    %c0_108 = arith.constant 0 : index
    %c0_109 = arith.constant 0 : index
    %500 = vector.load %arg6[%c0_108, %c0_109] : memref<8x32xf32, #tpu.memory_space<vmem>>, vector<8x32xf32>
    tpu.vector_store %arg6[%c0_108, %c0_109], %480 {strides = array<i32>} : memref<8x32xf32, #tpu.memory_space<vmem>>, vector<8x32xf32>,
    %c0_110 = arith.constant 0 : index
    %c0_111 = arith.constant 0 : index
    %c0_112 = arith.constant 0 : index
    %501 = vector.load %arg5[%c0_110, %c0_111, %c0_112] : memref<10x8x16xf32, #tpu.memory_space<vmem>>, vector<10x8x16xf32>
    %cst_113 = arith.constant dense<0xFF800000> : vector<10x8xf32>
    %502 = vector.multi_reduction <maximumf>, %501, %cst_113 [2] : vector<10x8x16xf32> to vector<10x8xf32>
    %503 = vector.shape_cast %502 : vector<10x8xf32> to vector<10x8x1xf32>
    %504 = vector.broadcast %503 : vector<10x8x1xf32> to vector<10x8x16xf32>
    %505 = arith.subf %501, %504 : vector<10x8x16xf32>
    %506 = math.exp %505 : vector<10x8x16xf32>
    %cst_114 = arith.constant dense<0.000000e+00> : vector<10x8xf32>
    %507 = vector.multi_reduction <add>, %506, %cst_114 [2] : vector<10x8x16xf32> to vector<10x8xf32>
    %508 = vector.shape_cast %507 : vector<10x8xf32> to vector<10x8x1xf32>
    %509 = math.log %508 : vector<10x8x1xf32>
    %510 = vector.broadcast %509 : vector<10x8x1xf32> to vector<10x8x16xf32>
    %511 = arith.subf %505, %510 : vector<10x8x16xf32>
    %c0_115 = arith.constant 0 : index
    %c0_116 = arith.constant 0 : index
    %c0_117 = arith.constant 0 : index
    %512 = vector.load %arg5[%c0_115, %c0_116, %c0_117] : memref<10x8x16xf32, #tpu.memory_space<vmem>>, vector<10x8x16xf32>
    tpu.vector_store %arg5[%c0_115, %c0_116, %c0_117], %511 {strides = array<i32>} : memref<10x8x16xf32, #tpu.memory_space<vmem>>, vector<10x8x16xf32>,
    return
  }
}

</mosaic_0001>

<llo_original>
// kernel: decoder_forward.1
$region0: #{decoder_forward.1}
  #allocation0 [shape = 'u32[]', space=smem, size = 0x4, offset = 0x4, fixed_abs, tag = 'smem constant byte address 0x4 - core index']
  #allocation1 [shape = 'u32[72,128]{1,0:T(1,128)}', space=vmem, size = 0x9000, scoped, tag = 'internal scratch']
  %s0 = inlined_call_operand.vmem [shape: f32[8,32], index: 0, kind: input, shape index: {}]
  %s1 = inlined_call_operand.vmem [shape: f32[48,192], index: 1, kind: input, shape index: {}]
  %s2 = inlined_call_operand.vmem [shape: f32[1,192], index: 2, kind: input, shape index: {}]
  %s3 = inlined_call_operand.vmem [shape: f32[32,16], index: 3, kind: input, shape index: {}]
  %s4 = inlined_call_operand.vmem [shape: f32[1,16], index: 4, kind: input, shape index: {}]
  %s5 = inlined_call_operand.hbm [shape: f32[10,8,16], index: 5, kind: output, shape index: {0}]
  %s6 = inlined_call_operand.hbm [shape: f32[8,32], index: 6, kind: output, shape index: {1}]
  %7 = xla_tuple %s5, %s6
  %s8 = sld [smem:[#allocation0]]
  $region38: #{decoder_forward.1} parent=0
    _
  %s10 = ssub.s32 1, %s8
  %s11 = scalar_select 0, %s10, %s8
  $region1: #{decoder_forward.1} parent=0
    #allocation2 [shape = 'u8[40960]{0}', space=vmem, size = 0xa000, scoped, tag = 'output window, operand 0, single buffered']
    #allocation3 [shape = 's32[1]{0}', space=sflag, size = 0x4, scoped, tag = 'scoped memory for decoder_forward.1']
    #allocation4 [shape = 'u8[4096]{0}', space=vmem, size = 0x1000, scoped, tag = 'output window, operand 1, single buffered']
    #allocation5 [shape = 's32[1]{0}', space=sflag, size = 0x4, scoped, tag = 'scoped memory for decoder_forward.1']
    %12 = vsyncpa [#allocation3], 0
    %13 = vsyncpa [#allocation5], 0
    // Predicated region
    $region2: #{decoder_forward.1} parent=1 // pred_check
      _
    $region3: #{decoder_forward.1} parent=1 // pred_check_branch
      %15 = sbr.rel (0) target = $region5
    $region4: #{decoder_forward.1} parent=1 // pred_region
      _
    $region5: #{decoder_forward.1} parent=1 // pred_fallthru
      _
    // Predicated region
    $region6: #{decoder_forward.1} parent=1 // pred_check
      _
    $region7: #{decoder_forward.1} parent=1 // pred_check_branch
      %17 = sbr.rel (0) target = $region9
    $region8: #{decoder_forward.1} parent=1 // pred_region
      _
    $region9: #{decoder_forward.1} parent=1 // pred_fallthru
      _
    // Predicated region
    $region10: #{decoder_forward.1} parent=1 // pred_check
      _
    $region11: #{decoder_forward.1} parent=1 // pred_check_branch
      %19 = sbr.rel (0) target = $region13
    $region12: #{decoder_forward.1} parent=1 // pred_region
      _
    $region13: #{decoder_forward.1} parent=1 // pred_fallthru
      _
    // Predicated region
    $region14: #{decoder_forward.1} parent=1 // pred_check
      _
    $region15: #{decoder_forward.1} parent=1 // pred_check_branch
      %21 = sbr.rel (0) target = $region17
    $region16: #{decoder_forward.1} parent=1 // pred_region
      _
    $region17: #{decoder_forward.1} parent=1 // pred_fallthru
      _
    // Predicated region
    $region18: #{decoder_forward.1} parent=1 // pred_check
      _
    $region19: #{decoder_forward.1} parent=1 // pred_check_branch
      %23 = sbr.rel (0) target = $region21
    $region20: #{decoder_forward.1} parent=1 // pred_region
      _
    $region21: #{decoder_forward.1} parent=1 // pred_fallthru
      _
    %v24 = vlaneseq
    %v25 = vand.u32 %v24, 127
    %v26 = vld [vmem:[%s1] sm:$0xff]
    %v27 = vld [vmem:[%s1 + $0x8] sm:$0xff]
    %v28 = vld [vmem:[%s1 + $0x10] sm:$0xff]
    %v29 = vld [vmem:[%s1 + $0x18] sm:$0xff]
    %v30 = vld [vmem:[%s1 + $0x20] sm:$0xff]
    %v31 = vld [vmem:[%s1 + $0x28] sm:$0xff]
    %v32 = vld [vmem:[%s1 + $0x30] sm:$0xff]
    %v33 = vld [vmem:[%s1 + $0x38] sm:$0xff]
    %v34 = vld [vmem:[%s1 + $0x40] sm:$0xff]
    %v35 = vld [vmem:[%s1 + $0x48] sm:$0xff]
    %v36 = vld [vmem:[%s1 + $0x50] sm:$0xff]
    %v37 = vld [vmem:[%s1 + $0x58] sm:$0xff]
    %v38 = vld [vmem:[%s2] sm:$0x3]
    %v39 = vld [vmem:[%s3] sm:$0xff]
    %v40 = vld [vmem:[%s3 + $0x8] sm:$0xff]
    %v41 = vld [vmem:[%s3 + $0x10] sm:$0xff]
    %v42 = vld [vmem:[%s3 + $0x18] sm:$0xff]
    %v43 = vld [vmem:[%s4] sm:$0x1]
    %v44 = vld [vmem:[%s0] sm:$0xff]
    %vm45 = vcmp.eq.s32.totalorder %v25, 1
    %v46 = vsel %vm45, 1, 0
    %v47 = vcvt.s32.f32 %v46
    %49 = vrot.lane.b32.xlu0 %v44, 16
    %v50 = vpop.permute.xlu0 %49
    %vm52 = vcmask 130048
    %v53 = vsel %vm52, %v47, %v50
    %v55 = vperm.slane %v38, 0
    %v56 = vperm.slane %v38, 1
    %vm59 = vcmask 392192
    %v61 = vsel %vm59, %v53, 0
    %63 = vmatpush.msra.mxu0 0.0
    %64 = vmatpush.msra.mxu0 0.0
    %65 = vmatpush.msra.mxu0 0.0
    %66 = vmatpush.msra.mxu0 0.0
    %67 = vmatpush.msra.mxu0 0.0
    %68 = vmatpush.msra.mxu0 0.0
    %69 = vmatpush.msra.mxu0 0.0
    %70 = vmatpush.msra.mxu0 0.0
    %71 = vmatpush.msra.mxu0 0.0
    %72 = vmatpush.msra.mxu0 0.0
    %73 = vmatpush.msra.mxu0 %v36
    %74 = vmatpush.msra.mxu0 %v34
    %75 = vmatpush.msra.mxu0 %v32
    %76 = vmatpush.msra.mxu0 %v30
    %77 = vmatpush.msra.mxu0 %v28
    %78 = vmatpush.msra.mxu0 %v26
    %79 = vmatmul.f32.gmra.mxu0 %v61
    %v80 = vpop.f32.mrf.mxu0
    %v81 = vadd.f32 %v55, %v80
    %82 = vdwg.mxu0
    %83 = vmatpush.msra.mxu0 0.0
    %84 = vmatpush.msra.mxu0 0.0
    %85 = vmatpush.msra.mxu0 0.0
    %86 = vmatpush.msra.mxu0 0.0
    %87 = vmatpush.msra.mxu0 0.0
    %88 = vmatpush.msra.mxu0 0.0
    %89 = vmatpush.msra.mxu0 0.0
    %90 = vmatpush.msra.mxu0 0.0
    %91 = vmatpush.msra.mxu0 0.0
    %92 = vmatpush.msra.mxu0 0.0
    %93 = vmatpush.msra.mxu0 %v37
    %94 = vmatpush.msra.mxu0 %v35
    %95 = vmatpush.msra.mxu0 %v33
    %96 = vmatpush.msra.mxu0 %v31
    %97 = vmatpush.msra.mxu0 %v29
    %98 = vmatpush.msra.mxu0 %v27
    %99 = vmatmul.f32.gmra.mxu0 %v61
    %v100 = vpop.f32.mrf.mxu0
    %v101 = vadd.f32 %v56, %v100
    %102 = vdwg.mxu0
    %104 = vrot.lane.b32.xlu0 %v81, 32
    %v105 = vpop.permute.xlu0 %104
    %v107 = vadd.f32 %v81, %v105
    %v108 = vxor.u32 %v107, 2147483648
    %v109 = vmul.f32 %v108, 1.442695
    %v110 = vpow.pop %v109
    %v111 = vadd.f32 %v110, 1.0
    %v112 = vrcp.pop %v111
    %v113 = vmul.f32 %v111, %v112
    %v114 = vsub.f32 1.0, %v113
    %v115 = vmul.f32 %v112, %v114
    %v116 = vadd.f32 %v112, %v115
    %vm117 = vweird.f32 %v111
    %vm118 = vweird.f32 %v112
    %vm119 = vmor %vm117, %vm118
    %v120 = vsel %vm119, %v112, %v116
    %v121 = vand.u32 2147483647, %v111
    %vm122 = vcmp.eq.f32.partialorder %v121, 8.507059e+37
    %v123 = vand.u32 %v111, 2147483648
    %v124 = vor.u32 1.1754944e-38, %v123
    %v125 = vsel %vm122, %v124, %v120
    %v126 = vmul.f32 1.0, %v125
    %128 = vrot.lane.b32.xlu0 %v101, 32
    %v129 = vpop.permute.xlu0 %128
    %v131 = vadd.f32 %v81, %v129
    %v132 = vxor.u32 %v131, 2147483648
    %v133 = vmul.f32 %v132, 1.442695
    %v134 = vpow.pop %v133
    %v135 = vadd.f32 %v134, 1.0
    %v136 = vrcp.pop %v135
    %v137 = vmul.f32 %v135, %v136
    %v138 = vsub.f32 1.0, %v137
    %v139 = vmul.f32 %v136, %v138
    %v140 = vadd.f32 %v136, %v139
    %vm141 = vweird.f32 %v135
    %vm142 = vweird.f32 %v136
    %vm143 = vmor %vm141, %vm142
    %v144 = vsel %vm143, %v136, %v140
    %v145 = vand.u32 2147483647, %v135
    %vm146 = vcmp.eq.f32.partialorder %v145, 8.507059e+37
    %v147 = vand.u32 %v135, 2147483648
    %v148 = vor.u32 1.1754944e-38, %v147
    %v149 = vsel %vm146, %v148, %v144
    %v150 = vmul.f32 1.0, %v149
    %151 = vrot.lane.b32.xlu0 %v101, 96
    %v152 = vpop.permute.xlu0 %151
    %v154 = vmul.f32 %v126, %v152
    %156 = vrot.lane.b32.xlu0 %v154, 64
    %v157 = vpop.permute.xlu0 %156
    %v159 = vadd.f32 %v81, %v157
    %v160 = vtanh.pop %v159
    %v161 = vsub.f32 1.0, %v150
    %163 = vrot.lane.b32.xlu0 %v160, 96
    %v164 = vpop.permute.xlu0 %163
    %v166 = vmul.f32 %v161, %v164
    %167 = vrot.lane.b32.xlu0 %v44, 32
    %v168 = vpop.permute.xlu0 %167
    %v170 = vmul.f32 %v150, %v168
    %v171 = vadd.f32 %v166, %v170
    %v173 = vperm.slane %v43, 0
    %176 = vrot.lane.b32.xlu0 %v171, 96
    %v177 = vpop.permute.xlu0 %176
    %vm178 = vcmask 261120
    %v179 = vsel %vm178, %v177, 0
    %181 = vmatpush.msra.mxu0 0.0
    %182 = vmatpush.msra.mxu0 0.0
    %183 = vmatpush.msra.mxu0 0.0
    %184 = vmatpush.msra.mxu0 0.0
    %185 = vmatpush.msra.mxu0 0.0
    %186 = vmatpush.msra.mxu0 0.0
    %187 = vmatpush.msra.mxu0 0.0
    %188 = vmatpush.msra.mxu0 0.0
    %189 = vmatpush.msra.mxu0 0.0
    %190 = vmatpush.msra.mxu0 0.0
    %191 = vmatpush.msra.mxu0 0.0
    %192 = vmatpush.msra.mxu0 0.0
    %193 = vmatpush.msra.mxu0 %v42
    %194 = vmatpush.msra.mxu0 %v41
    %195 = vmatpush.msra.mxu0 %v40
    %196 = vmatpush.msra.mxu0 %v39
    %197 = vmatmul.f32.gmra.mxu0 %v179
    %v198 = vpop.f32.mrf.mxu0
    %v199 = vadd.f32 %v173, %v198
    %200 = vdwg.mxu0
    %201 = vst.msk [vmem:[#allocation2] sm:$0xff] %vm52, %v199
    %v202 = vsel %vm52, %v199, -inf
    %203 = vmax.xlane.f32.xlu0 %v202
    %v204 = vpop.xlane.xlu0 %203
    %vm205 = vcmp.eq.f32.partialorder %v199, %v204
    %v206 = vsel %vm205, %v25, 16
    %v207 = vsel %vm52, %v206, 2147483647
    %v208 = vand.u32 %v207, 65535
    %v209 = vshra.s32 %v207, 16
    %v210 = vcvt.s32.f32 %v208
    %v211 = vcvt.s32.f32 %v209
    %212 = vmin.xlane.f32.xlu0 %v211
    %v213 = vpop.xlane.xlu0 %212
    %vm214 = vcmp.eq.f32.partialorder %v211, %v213
    %v215 = vsel %vm214, %v210, inf
    %216 = vmin.xlane.f32.xlu0 %v215
    %v217 = vpop.xlane.xlu0 %216
    %v218 = vcvt.f32.s32 %v217
    %v219 = vcvt.f32.s32 %v213
    %v220 = vshll.u32 %v219, 16
    %v221 = vadd.s32 %v220, %v218
    %vm222 = vcmp.eq.s32.totalorder %v25, %v221
    %v223 = vsel %vm222, 1, 0
    %v224 = vcvt.s32.f32 %v223
    %225 = vrot.lane.b32.xlu0 %v171, 112
    %v226 = vpop.permute.xlu0 %225
    %v228 = vsel %vm52, %v224, %v226
    %v230 = vsel %vm59, %v228, 0
    %232 = vmatpush.msra.mxu0 0.0
    %233 = vmatpush.msra.mxu0 0.0
    %234 = vmatpush.msra.mxu0 0.0
    %235 = vmatpush.msra.mxu0 0.0
    %236 = vmatpush.msra.mxu0 0.0
    %237 = vmatpush.msra.mxu0 0.0
    %238 = vmatpush.msra.mxu0 0.0
    %239 = vmatpush.msra.mxu0 0.0
    %240 = vmatpush.msra.mxu0 0.0
    %241 = vmatpush.msra.mxu0 0.0
    %242 = vmatpush.msra.mxu0 %v36
    %243 = vmatpush.msra.mxu0 %v34
    %244 = vmatpush.msra.mxu0 %v32
    %245 = vmatpush.msra.mxu0 %v30
    %246 = vmatpush.msra.mxu0 %v28
    %247 = vmatpush.msra.mxu0 %v26
    %248 = vmatmul.f32.gmra.mxu0 %v230
    %v249 = vpop.f32.mrf.mxu0
    %v250 = vadd.f32 %v55, %v249
    %251 = vdwg.mxu0
    %252 = vmatpush.msra.mxu0 0.0
    %253 = vmatpush.msra.mxu0 0.0
    %254 = vmatpush.msra.mxu0 0.0
    %255 = vmatpush.msra.mxu0 0.0
    %256 = vmatpush.msra.mxu0 0.0
    %257 = vmatpush.msra.mxu0 0.0
    %258 = vmatpush.msra.mxu0 0.0
    %259 = vmatpush.msra.mxu0 0.0
    %260 = vmatpush.msra.mxu0 0.0
    %261 = vmatpush.msra.mxu0 0.0
    %262 = vmatpush.msra.mxu0 %v37
    %263 = vmatpush.msra.mxu0 %v35
    %264 = vmatpush.msra.mxu0 %v33
    %265 = vmatpush.msra.mxu0 %v31
    %266 = vmatpush.msra.mxu0 %v29
    %267 = vmatpush.msra.mxu0 %v27
    %268 = vmatmul.f32.gmra.mxu0 %v230
    %v269 = vpop.f32.mrf.mxu0
    %v270 = vadd.f32 %v56, %v269
    %271 = vdwg.mxu0
    %273 = vrot.lane.b32.xlu0 %v250, 32
    %v274 = vpop.permute.xlu0 %273
    %v276 = vadd.f32 %v250, %v274
    %v277 = vxor.u32 %v276, 2147483648
    %v278 = vmul.f32 %v277, 1.442695
    %v279 = vpow.pop %v278
    %v280 = vadd.f32 %v279, 1.0
    %v281 = vrcp.pop %v280
    %v282 = vmul.f32 %v280, %v281
    %v283 = vsub.f32 1.0, %v282
    %v284 = vmul.f32 %v281, %v283
    %v285 = vadd.f32 %v281, %v284
    %vm286 = vweird.f32 %v280
    %vm287 = vweird.f32 %v281
    %vm288 = vmor %vm286, %vm287
    %v289 = vsel %vm288, %v281, %v285
    %v290 = vand.u32 2147483647, %v280
    %vm291 = vcmp.eq.f32.partialorder %v290, 8.507059e+37
    %v292 = vand.u32 %v280, 2147483648
    %v293 = vor.u32 1.1754944e-38, %v292
    %v294 = vsel %vm291, %v293, %v289
    %v295 = vmul.f32 1.0, %v294
    %297 = vrot.lane.b32.xlu0 %v270, 32
    %v298 = vpop.permute.xlu0 %297
    %v300 = vadd.f32 %v250, %v298
    %v301 = vxor.u32 %v300, 2147483648
    %v302 = vmul.f32 %v301, 1.442695
    %v303 = vpow.pop %v302
    %v304 = vadd.f32 %v303, 1.0
    %v305 = vrcp.pop %v304
    %v306 = vmul.f32 %v304, %v305
    %v307 = vsub.f32 1.0, %v306
    %v308 = vmul.f32 %v305, %v307
    %v309 = vadd.f32 %v305, %v308
    %vm310 = vweird.f32 %v304
    %vm311 = vweird.f32 %v305
    %vm312 = vmor %vm310, %vm311
    %v313 = vsel %vm312, %v305, %v309
    %v314 = vand.u32 2147483647, %v304
    %vm315 = vcmp.eq.f32.partialorder %v314, 8.507059e+37
    %v316 = vand.u32 %v304, 2147483648
    %v317 = vor.u32 1.1754944e-38, %v316
    %v318 = vsel %vm315, %v317, %v313
    %v319 = vmul.f32 1.0, %v318
    %320 = vrot.lane.b32.xlu0 %v270, 96
    %v321 = vpop.permute.xlu0 %320
    %v323 = vmul.f32 %v295, %v321
    %325 = vrot.lane.b32.xlu0 %v323, 64
    %v326 = vpop.permute.xlu0 %325
    %v328 = vadd.f32 %v250, %v326
    %v329 = vtanh.pop %v328
    %v330 = vsub.f32 1.0, %v319
    %332 = vrot.lane.b32.xlu0 %v329, 96
    %v333 = vpop.permute.xlu0 %332
    %v335 = vmul.f32 %v330, %v333
    %v336 = vmul.f32 %v319, %v171
    %v337 = vadd.f32 %v335, %v336
    %339 = vrot.lane.b32.xlu0 %v337, 96
    %v340 = vpop.permute.xlu0 %339
    %v341 = vsel %vm178, %v340, 0
    %343 = vmatpush.msra.mxu0 0.0
    %344 = vmatpush.msra.mxu0 0.0
    %345 = vmatpush.msra.mxu0 0.0
    %346 = vmatpush.msra.mxu0 0.0
    %347 = vmatpush.msra.mxu0 0.0
    %348 = vmatpush.msra.mxu0 0.0
    %349 = vmatpush.msra.mxu0 0.0
    %350 = vmatpush.msra.mxu0 0.0
    %351 = vmatpush.msra.mxu0 0.0
    %352 = vmatpush.msra.mxu0 0.0
    %353 = vmatpush.msra.mxu0 0.0
    %354 = vmatpush.msra.mxu0 0.0
    %355 = vmatpush.msra.mxu0 %v42
    %356 = vmatpush.msra.mxu0 %v41
    %357 = vmatpush.msra.mxu0 %v40
    %358 = vmatpush.msra.mxu0 %v39
    %359 = vmatmul.f32.gmra.mxu0 %v341
    %v360 = vpop.f32.mrf.mxu0
    %v361 = vadd.f32 %v173, %v360
    %362 = vdwg.mxu0
    %s363 = scalar_lea.vmem [#allocation2], 8
    %364 = vst.msk [vmem:[%s363] sm:$0xff] %vm52, %v361
    %v365 = vsel %vm52, %v361, -inf
    %366 = vmax.xlane.f32.xlu0 %v365
    %v367 = vpop.xlane.xlu0 %366
    %vm368 = vcmp.eq.f32.partialorder %v361, %v367
    %v369 = vsel %vm368, %v25, 16
    %v370 = vsel %vm52, %v369, 2147483647
    %v371 = vand.u32 %v370, 65535
    %v372 = vshra.s32 %v370, 16
    %v373 = vcvt.s32.f32 %v371
    %v374 = vcvt.s32.f32 %v372
    %375 = vmin.xlane.f32.xlu0 %v374
    %v376 = vpop.xlane.xlu0 %375
    %vm377 = vcmp.eq.f32.partialorder %v374, %v376
    %v378 = vsel %vm377, %v373, inf
    %379 = vmin.xlane.f32.xlu0 %v378
    %v380 = vpop.xlane.xlu0 %379
    %v381 = vcvt.f32.s32 %v380
    %v382 = vcvt.f32.s32 %v376
    %v383 = vshll.u32 %v382, 16
    %v384 = vadd.s32 %v383, %v381
    %vm385 = vcmp.eq.s32.totalorder %v25, %v384
    %v386 = vsel %vm385, 1, 0
    %v387 = vcvt.s32.f32 %v386
    %388 = vrot.lane.b32.xlu0 %v337, 112
    %v389 = vpop.permute.xlu0 %388
    %v391 = vsel %vm52, %v387, %v389
    %v393 = vsel %vm59, %v391, 0
    %395 = vmatpush.msra.mxu0 0.0
    %396 = vmatpush.msra.mxu0 0.0
    %397 = vmatpush.msra.mxu0 0.0
    %398 = vmatpush.msra.mxu0 0.0
    %399 = vmatpush.msra.mxu0 0.0
    %400 = vmatpush.msra.mxu0 0.0
    %401 = vmatpush.msra.mxu0 0.0
    %402 = vmatpush.msra.mxu0 0.0
    %403 = vmatpush.msra.mxu0 0.0
    %404 = vmatpush.msra.mxu0 0.0
    %405 = vmatpush.msra.mxu0 %v36
    %406 = vmatpush.msra.mxu0 %v34
    %407 = vmatpush.msra.mxu0 %v32
    %408 = vmatpush.msra.mxu0 %v30
    %409 = vmatpush.msra.mxu0 %v28
    %410 = vmatpush.msra.mxu0 %v26
    %411 = vmatmul.f32.gmra.mxu0 %v393
    %v412 = vpop.f32.mrf.mxu0
    %v413 = vadd.f32 %v55, %v412
    %414 = vdwg.mxu0
    %415 = vmatpush.msra.mxu0 0.0
    %416 = vmatpush.msra.mxu0 0.0
    %417 = vmatpush.msra.mxu0 0.0
    %418 = vmatpush.msra.mxu0 0.0
    %419 = vmatpush.msra.mxu0 0.0
    %420 = vmatpush.msra.mxu0 0.0
    %421 = vmatpush.msra.mxu0 0.0
    %422 = vmatpush.msra.mxu0 0.0
    %423 = vmatpush.msra.mxu0 0.0
    %424 = vmatpush.msra.mxu0 0.0
    %425 = vmatpush.msra.mxu0 %v37
    %426 = vmatpush.msra.mxu0 %v35
    %427 = vmatpush.msra.mxu0 %v33
    %428 = vmatpush.msra.mxu0 %v31
    %429 = vmatpush.msra.mxu0 %v29
    %430 = vmatpush.msra.mxu0 %v27
    %431 = vmatmul.f32.gmra.mxu0 %v393
    %v432 = vpop.f32.mrf.mxu0
    %v433 = vadd.f32 %v56, %v432
    %434 = vdwg.mxu0
    %436 = vrot.lane.b32.xlu0 %v413, 32
    %v437 = vpop.permute.xlu0 %436
    %v439 = vadd.f32 %v413, %v437
    %v440 = vxor.u32 %v439, 2147483648
    %v441 = vmul.f32 %v440, 1.442695
    %v442 = vpow.pop %v441
    %v443 = vadd.f32 %v442, 1.0
    %v444 = vrcp.pop %v443
    %v445 = vmul.f32 %v443, %v444
    %v446 = vsub.f32 1.0, %v445
    %v447 = vmul.f32 %v444, %v446
    %v448 = vadd.f32 %v444, %v447
    %vm449 = vweird.f32 %v443
    %vm450 = vweird.f32 %v444
    %vm451 = vmor %vm449, %vm450
    %v452 = vsel %vm451, %v444, %v448
    %v453 = vand.u32 2147483647, %v443
    %vm454 = vcmp.eq.f32.partialorder %v453, 8.507059e+37
    %v455 = vand.u32 %v443, 2147483648
    %v456 = vor.u32 1.1754944e-38, %v455
    %v457 = vsel %vm454, %v456, %v452
    %v458 = vmul.f32 1.0, %v457
    %460 = vrot.lane.b32.xlu0 %v433, 32
    %v461 = vpop.permute.xlu0 %460
    %v463 = vadd.f32 %v413, %v461
    %v464 = vxor.u32 %v463, 2147483648
    %v465 = vmul.f32 %v464, 1.442695
    %v466 = vpow.pop %v465
    %v467 = vadd.f32 %v466, 1.0
    %v468 = vrcp.pop %v467
    %v469 = vmul.f32 %v467, %v468
    %v470 = vsub.f32 1.0, %v469
    %v471 = vmul.f32 %v468, %v470
    %v472 = vadd.f32 %v468, %v471
    %vm473 = vweird.f32 %v467
    %vm474 = vweird.f32 %v468
    %vm475 = vmor %vm473, %vm474
    %v476 = vsel %vm475, %v468, %v472
    %v477 = vand.u32 2147483647, %v467
    %vm478 = vcmp.eq.f32.partialorder %v477, 8.507059e+37
    %v479 = vand.u32 %v467, 2147483648
    %v480 = vor.u32 1.1754944e-38, %v479
    %v481 = vsel %vm478, %v480, %v476
    %v482 = vmul.f32 1.0, %v481
    %483 = vrot.lane.b32.xlu0 %v433, 96
    %v484 = vpop.permute.xlu0 %483
    %v486 = vmul.f32 %v458, %v484
    %488 = vrot.lane.b32.xlu0 %v486, 64
    %v489 = vpop.permute.xlu0 %488
    %v491 = vadd.f32 %v413, %v489
    %v492 = vtanh.pop %v491
    %v493 = vsub.f32 1.0, %v482
    %495 = vrot.lane.b32.xlu0 %v492, 96
    %v496 = vpop.permute.xlu0 %495
    %v498 = vmul.f32 %v493, %v496
    %v499 = vmul.f32 %v482, %v337
    %v500 = vadd.f32 %v498, %v499
    %502 = vrot.lane.b32.xlu0 %v500, 96
    %v503 = vpop.permute.xlu0 %502
    %v504 = vsel %vm178, %v503, 0
    %506 = vmatpush.msra.mxu0 0.0
    %507 = vmatpush.msra.mxu0 0.0
    %508 = vmatpush.msra.mxu0 0.0
    %509 = vmatpush.msra.mxu0 0.0
    %510 = vmatpush.msra.mxu0 0.0
    %511 = vmatpush.msra.mxu0 0.0
    %512 = vmatpush.msra.mxu0 0.0
    %513 = vmatpush.msra.mxu0 0.0
    %514 = vmatpush.msra.mxu0 0.0
    %515 = vmatpush.msra.mxu0 0.0
    %516 = vmatpush.msra.mxu0 0.0
    %517 = vmatpush.msra.mxu0 0.0
    %518 = vmatpush.msra.mxu0 %v42
    %519 = vmatpush.msra.mxu0 %v41
    %520 = vmatpush.msra.mxu0 %v40
    %521 = vmatpush.msra.mxu0 %v39
    %522 = vmatmul.f32.gmra.mxu0 %v504
    %v523 = vpop.f32.mrf.mxu0
    %v524 = vadd.f32 %v173, %v523
    %525 = vdwg.mxu0
    %s526 = scalar_lea.vmem [#allocation2], 16
    %527 = vst.msk [vmem:[%s526] sm:$0xff] %vm52, %v524
    %v528 = vsel %vm52, %v524, -inf
    %529 = vmax.xlane.f32.xlu0 %v528
    %v530 = vpop.xlane.xlu0 %529
    %vm531 = vcmp.eq.f32.partialorder %v524, %v530
    %v532 = vsel %vm531, %v25, 16
    %v533 = vsel %vm52, %v532, 2147483647
    %v534 = vand.u32 %v533, 65535
    %v535 = vshra.s32 %v533, 16
    %v536 = vcvt.s32.f32 %v534
    %v537 = vcvt.s32.f32 %v535
    %538 = vmin.xlane.f32.xlu0 %v537
    %v539 = vpop.xlane.xlu0 %538
    %vm540 = vcmp.eq.f32.partialorder %v537, %v539
    %v541 = vsel %vm540, %v536, inf
    %542 = vmin.xlane.f32.xlu0 %v541
    %v543 = vpop.xlane.xlu0 %542
    %v544 = vcvt.f32.s32 %v543
    %v545 = vcvt.f32.s32 %v539
    %v546 = vshll.u32 %v545, 16
    %v547 = vadd.s32 %v546, %v544
    %vm548 = vcmp.eq.s32.totalorder %v25, %v547
    %v549 = vsel %vm548, 1, 0
    %v550 = vcvt.s32.f32 %v549
    %551 = vrot.lane.b32.xlu0 %v500, 112
    %v552 = vpop.permute.xlu0 %551
    %v554 = vsel %vm52, %v550, %v552
    %v556 = vsel %vm59, %v554, 0
    %558 = vmatpush.msra.mxu0 0.0
    %559 = vmatpush.msra.mxu0 0.0
    %560 = vmatpush.msra.mxu0 0.0
    %561 = vmatpush.msra.mxu0 0.0
    %562 = vmatpush.msra.mxu0 0.0
    %563 = vmatpush.msra.mxu0 0.0
    %564 = vmatpush.msra.mxu0 0.0
    %565 = vmatpush.msra.mxu0 0.0
    %566 = vmatpush.msra.mxu0 0.0
    %567 = vmatpush.msra.mxu0 0.0
    %568 = vmatpush.msra.mxu0 %v36
    %569 = vmatpush.msra.mxu0 %v34
    %570 = vmatpush.msra.mxu0 %v32
    %571 = vmatpush.msra.mxu0 %v30
    %572 = vmatpush.msra.mxu0 %v28
    %573 = vmatpush.msra.mxu0 %v26
    %574 = vmatmul.f32.gmra.mxu0 %v556
    %v575 = vpop.f32.mrf.mxu0
    %v576 = vadd.f32 %v55, %v575
    %577 = vdwg.mxu0
    %578 = vmatpush.msra.mxu0 0.0
    %579 = vmatpush.msra.mxu0 0.0
    %580 = vmatpush.msra.mxu0 0.0
    %581 = vmatpush.msra.mxu0 0.0
    %582 = vmatpush.msra.mxu0 0.0
    %583 = vmatpush.msra.mxu0 0.0
    %584 = vmatpush.msra.mxu0 0.0
    %585 = vmatpush.msra.mxu0 0.0
    %586 = vmatpush.msra.mxu0 0.0
    %587 = vmatpush.msra.mxu0 0.0
    %588 = vmatpush.msra.mxu0 %v37
    %589 = vmatpush.msra.mxu0 %v35
    %590 = vmatpush.msra.mxu0 %v33
    %591 = vmatpush.msra.mxu0 %v31
    %592 = vmatpush.msra.mxu0 %v29
    %593 = vmatpush.msra.mxu0 %v27
    %594 = vmatmul.f32.gmra.mxu0 %v556
    %v595 = vpop.f32.mrf.mxu0
    %v596 = vadd.f32 %v56, %v595
    %597 = vdwg.mxu0
    %599 = vrot.lane.b32.xlu0 %v576, 32
    %v600 = vpop.permute.xlu0 %599
    %v602 = vadd.f32 %v576, %v600
    %v603 = vxor.u32 %v602, 2147483648
    %v604 = vmul.f32 %v603, 1.442695
    %v605 = vpow.pop %v604
    %v606 = vadd.f32 %v605, 1.0
    %v607 = vrcp.pop %v606
    %v608 = vmul.f32 %v606, %v607
    %v609 = vsub.f32 1.0, %v608
    %v610 = vmul.f32 %v607, %v609
    %v611 = vadd.f32 %v607, %v610
    %vm612 = vweird.f32 %v606
    %vm613 = vweird.f32 %v607
    %vm614 = vmor %vm612, %vm613
    %v615 = vsel %vm614, %v607, %v611
    %v616 = vand.u32 2147483647, %v606
    %vm617 = vcmp.eq.f32.partialorder %v616, 8.507059e+37
    %v618 = vand.u32 %v606, 2147483648
    %v619 = vor.u32 1.1754944e-38, %v618
    %v620 = vsel %vm617, %v619, %v615
    %v621 = vmul.f32 1.0, %v620
    %623 = vrot.lane.b32.xlu0 %v596, 32
    %v624 = vpop.permute.xlu0 %623
    %v626 = vadd.f32 %v576, %v624
    %v627 = vxor.u32 %v626, 2147483648
    %v628 = vmul.f32 %v627, 1.442695
    %v629 = vpow.pop %v628
    %v630 = vadd.f32 %v629, 1.0
    %v631 = vrcp.pop %v630
    %v632 = vmul.f32 %v630, %v631
    %v633 = vsub.f32 1.0, %v632
    %v634 = vmul.f32 %v631, %v633
    %v635 = vadd.f32 %v631, %v634
    %vm636 = vweird.f32 %v630
    %vm637 = vweird.f32 %v631
    %vm638 = vmor %vm636, %vm637
    %v639 = vsel %vm638, %v631, %v635
    %v640 = vand.u32 2147483647, %v630
    %vm641 = vcmp.eq.f32.partialorder %v640, 8.507059e+37
    %v642 = vand.u32 %v630, 2147483648
    %v643 = vor.u32 1.1754944e-38, %v642
    %v644 = vsel %vm641, %v643, %v639
    %v645 = vmul.f32 1.0, %v644
    %646 = vrot.lane.b32.xlu0 %v596, 96
    %v647 = vpop.permute.xlu0 %646
    %v649 = vmul.f32 %v621, %v647
    %651 = vrot.lane.b32.xlu0 %v649, 64
    %v652 = vpop.permute.xlu0 %651
    %v654 = vadd.f32 %v576, %v652
    %v655 = vtanh.pop %v654
    %v656 = vsub.f32 1.0, %v645
    %658 = vrot.lane.b32.xlu0 %v655, 96
    %v659 = vpop.permute.xlu0 %658
    %v661 = vmul.f32 %v656, %v659
    %v662 = vmul.f32 %v645, %v500
    %v663 = vadd.f32 %v661, %v662
    %665 = vrot.lane.b32.xlu0 %v663, 96
    %v666 = vpop.permute.xlu0 %665
    %v667 = vsel %vm178, %v666, 0
    %669 = vmatpush.msra.mxu0 0.0
    %670 = vmatpush.msra.mxu0 0.0
    %671 = vmatpush.msra.mxu0 0.0
    %672 = vmatpush.msra.mxu0 0.0
    %673 = vmatpush.msra.mxu0 0.0
    %674 = vmatpush.msra.mxu0 0.0
    %675 = vmatpush.msra.mxu0 0.0
    %676 = vmatpush.msra.mxu0 0.0
    %677 = vmatpush.msra.mxu0 0.0
    %678 = vmatpush.msra.mxu0 0.0
    %679 = vmatpush.msra.mxu0 0.0
    %680 = vmatpush.msra.mxu0 0.0
    %681 = vmatpush.msra.mxu0 %v42
    %682 = vmatpush.msra.mxu0 %v41
    %683 = vmatpush.msra.mxu0 %v40
    %684 = vmatpush.msra.mxu0 %v39
    %685 = vmatmul.f32.gmra.mxu0 %v667
    %v686 = vpop.f32.mrf.mxu0
    %v687 = vadd.f32 %v173, %v686
    %688 = vdwg.mxu0
    %s689 = scalar_lea.vmem [#allocation2], 24
    %690 = vst.msk [vmem:[%s689] sm:$0xff] %vm52, %v687
    %v691 = vsel %vm52, %v687, -inf
    %692 = vmax.xlane.f32.xlu0 %v691
    %v693 = vpop.xlane.xlu0 %692
    %vm694 = vcmp.eq.f32.partialorder %v687, %v693
    %v695 = vsel %vm694, %v25, 16
    %v696 = vsel %vm52, %v695, 2147483647
    %v697 = vand.u32 %v696, 65535
    %v698 = vshra.s32 %v696, 16
    %v699 = vcvt.s32.f32 %v697
    %v700 = vcvt.s32.f32 %v698
    %701 = vmin.xlane.f32.xlu0 %v700
    %v702 = vpop.xlane.xlu0 %701
    %vm703 = vcmp.eq.f32.partialorder %v700, %v702
    %v704 = vsel %vm703, %v699, inf
    %705 = vmin.xlane.f32.xlu0 %v704
    %v706 = vpop.xlane.xlu0 %705
    %v707 = vcvt.f32.s32 %v706
    %v708 = vcvt.f32.s32 %v702
    %v709 = vshll.u32 %v708, 16
    %v710 = vadd.s32 %v709, %v707
    %vm711 = vcmp.eq.s32.totalorder %v25, %v710
    %v712 = vsel %vm711, 1, 0
    %v713 = vcvt.s32.f32 %v712
    %714 = vrot.lane.b32.xlu0 %v663, 112
    %v715 = vpop.permute.xlu0 %714
    %v717 = vsel %vm52, %v713, %v715
    %v719 = vsel %vm59, %v717, 0
    %721 = vmatpush.msra.mxu0 0.0
    %722 = vmatpush.msra.mxu0 0.0
    %723 = vmatpush.msra.mxu0 0.0
    %724 = vmatpush.msra.mxu0 0.0
    %725 = vmatpush.msra.mxu0 0.0
    %726 = vmatpush.msra.mxu0 0.0
    %727 = vmatpush.msra.mxu0 0.0
    %728 = vmatpush.msra.mxu0 0.0
    %729 = vmatpush.msra.mxu0 0.0
    %730 = vmatpush.msra.mxu0 0.0
    %731 = vmatpush.msra.mxu0 %v36
    %732 = vmatpush.msra.mxu0 %v34
    %733 = vmatpush.msra.mxu0 %v32
    %734 = vmatpush.msra.mxu0 %v30
    %735 = vmatpush.msra.mxu0 %v28
    %736 = vmatpush.msra.mxu0 %v26
    %737 = vmatmul.f32.gmra.mxu0 %v719
    %v738 = vpop.f32.mrf.mxu0
    %v739 = vadd.f32 %v55, %v738
    %740 = vdwg.mxu0
    %741 = vmatpush.msra.mxu0 0.0
    %742 = vmatpush.msra.mxu0 0.0
    %743 = vmatpush.msra.mxu0 0.0
    %744 = vmatpush.msra.mxu0 0.0
    %745 = vmatpush.msra.mxu0 0.0
    %746 = vmatpush.msra.mxu0 0.0
    %747 = vmatpush.msra.mxu0 0.0
    %748 = vmatpush.msra.mxu0 0.0
    %749 = vmatpush.msra.mxu0 0.0
    %750 = vmatpush.msra.mxu0 0.0
    %751 = vmatpush.msra.mxu0 %v37
    %752 = vmatpush.msra.mxu0 %v35
    %753 = vmatpush.msra.mxu0 %v33
    %754 = vmatpush.msra.mxu0 %v31
    %755 = vmatpush.msra.mxu0 %v29
    %756 = vmatpush.msra.mxu0 %v27
    %757 = vmatmul.f32.gmra.mxu0 %v719
    %v758 = vpop.f32.mrf.mxu0
    %v759 = vadd.f32 %v56, %v758
    %760 = vdwg.mxu0
    %762 = vrot.lane.b32.xlu0 %v739, 32
    %v763 = vpop.permute.xlu0 %762
    %v765 = vadd.f32 %v739, %v763
    %v766 = vxor.u32 %v765, 2147483648
    %v767 = vmul.f32 %v766, 1.442695
    %v768 = vpow.pop %v767
    %v769 = vadd.f32 %v768, 1.0
    %v770 = vrcp.pop %v769
    %v771 = vmul.f32 %v769, %v770
    %v772 = vsub.f32 1.0, %v771
    %v773 = vmul.f32 %v770, %v772
    %v774 = vadd.f32 %v770, %v773
    %vm775 = vweird.f32 %v769
    %vm776 = vweird.f32 %v770
    %vm777 = vmor %vm775, %vm776
    %v778 = vsel %vm777, %v770, %v774
    %v779 = vand.u32 2147483647, %v769
    %vm780 = vcmp.eq.f32.partialorder %v779, 8.507059e+37
    %v781 = vand.u32 %v769, 2147483648
    %v782 = vor.u32 1.1754944e-38, %v781
    %v783 = vsel %vm780, %v782, %v778
    %v784 = vmul.f32 1.0, %v783
    %786 = vrot.lane.b32.xlu0 %v759, 32
    %v787 = vpop.permute.xlu0 %786
    %v789 = vadd.f32 %v739, %v787
    %v790 = vxor.u32 %v789, 2147483648
    %v791 = vmul.f32 %v790, 1.442695
    %v792 = vpow.pop %v791
    %v793 = vadd.f32 %v792, 1.0
    %v794 = vrcp.pop %v793
    %v795 = vmul.f32 %v793, %v794
    %v796 = vsub.f32 1.0, %v795
    %v797 = vmul.f32 %v794, %v796
    %v798 = vadd.f32 %v794, %v797
    %vm799 = vweird.f32 %v793
    %vm800 = vweird.f32 %v794
    %vm801 = vmor %vm799, %vm800
    %v802 = vsel %vm801, %v794, %v798
    %v803 = vand.u32 2147483647, %v793
    %vm804 = vcmp.eq.f32.partialorder %v803, 8.507059e+37
    %v805 = vand.u32 %v793, 2147483648
    %v806 = vor.u32 1.1754944e-38, %v805
    %v807 = vsel %vm804, %v806, %v802
    %v808 = vmul.f32 1.0, %v807
    %809 = vrot.lane.b32.xlu0 %v759, 96
    %v810 = vpop.permute.xlu0 %809
    %v812 = vmul.f32 %v784, %v810
    %814 = vrot.lane.b32.xlu0 %v812, 64
    %v815 = vpop.permute.xlu0 %814
    %v817 = vadd.f32 %v739, %v815
    %v818 = vtanh.pop %v817
    %v819 = vsub.f32 1.0, %v808
    %821 = vrot.lane.b32.xlu0 %v818, 96
    %v822 = vpop.permute.xlu0 %821
    %v824 = vmul.f32 %v819, %v822
    %v825 = vmul.f32 %v808, %v663
    %v826 = vadd.f32 %v824, %v825
    %828 = vrot.lane.b32.xlu0 %v826, 96
    %v829 = vpop.permute.xlu0 %828
    %v830 = vsel %vm178, %v829, 0
    %832 = vmatpush.msra.mxu0 0.0
    %833 = vmatpush.msra.mxu0 0.0
    %834 = vmatpush.msra.mxu0 0.0
    %835 = vmatpush.msra.mxu0 0.0
    %836 = vmatpush.msra.mxu0 0.0
    %837 = vmatpush.msra.mxu0 0.0
    %838 = vmatpush.msra.mxu0 0.0
    %839 = vmatpush.msra.mxu0 0.0
    %840 = vmatpush.msra.mxu0 0.0
    %841 = vmatpush.msra.mxu0 0.0
    %842 = vmatpush.msra.mxu0 0.0
    %843 = vmatpush.msra.mxu0 0.0
    %844 = vmatpush.msra.mxu0 %v42
    %845 = vmatpush.msra.mxu0 %v41
    %846 = vmatpush.msra.mxu0 %v40
    %847 = vmatpush.msra.mxu0 %v39
    %848 = vmatmul.f32.gmra.mxu0 %v830
    %v849 = vpop.f32.mrf.mxu0
    %v850 = vadd.f32 %v173, %v849
    %851 = vdwg.mxu0
    %s852 = scalar_lea.vmem [#allocation2], 32
    %853 = vst.msk [vmem:[%s852] sm:$0xff] %vm52, %v850
    %v854 = vsel %vm52, %v850, -inf
    %855 = vmax.xlane.f32.xlu0 %v854
    %v856 = vpop.xlane.xlu0 %855
    %vm857 = vcmp.eq.f32.partialorder %v850, %v856
    %v858 = vsel %vm857, %v25, 16
    %v859 = vsel %vm52, %v858, 2147483647
    %v860 = vand.u32 %v859, 65535
    %v861 = vshra.s32 %v859, 16
    %v862 = vcvt.s32.f32 %v860
    %v863 = vcvt.s32.f32 %v861
    %864 = vmin.xlane.f32.xlu0 %v863
    %v865 = vpop.xlane.xlu0 %864
    %vm866 = vcmp.eq.f32.partialorder %v863, %v865
    %v867 = vsel %vm866, %v862, inf
    %868 = vmin.xlane.f32.xlu0 %v867
    %v869 = vpop.xlane.xlu0 %868
    %v870 = vcvt.f32.s32 %v869
    %v871 = vcvt.f32.s32 %v865
    %v872 = vshll.u32 %v871, 16
    %v873 = vadd.s32 %v872, %v870
    %vm874 = vcmp.eq.s32.totalorder %v25, %v873
    %v875 = vsel %vm874, 1, 0
    %v876 = vcvt.s32.f32 %v875
    %877 = vrot.lane.b32.xlu0 %v826, 112
    %v878 = vpop.permute.xlu0 %877
    %v880 = vsel %vm52, %v876, %v878
    %v882 = vsel %vm59, %v880, 0
    %884 = vmatpush.msra.mxu0 0.0
    %885 = vmatpush.msra.mxu0 0.0
    %886 = vmatpush.msra.mxu0 0.0
    %887 = vmatpush.msra.mxu0 0.0
    %888 = vmatpush.msra.mxu0 0.0
    %889 = vmatpush.msra.mxu0 0.0
    %890 = vmatpush.msra.mxu0 0.0
    %891 = vmatpush.msra.mxu0 0.0
    %892 = vmatpush.msra.mxu0 0.0
    %893 = vmatpush.msra.mxu0 0.0
    %894 = vmatpush.msra.mxu0 %v36
    %895 = vmatpush.msra.mxu0 %v34
    %896 = vmatpush.msra.mxu0 %v32
    %897 = vmatpush.msra.mxu0 %v30
    %898 = vmatpush.msra.mxu0 %v28
    %899 = vmatpush.msra.mxu0 %v26
    %900 = vmatmul.f32.gmra.mxu0 %v882
    %v901 = vpop.f32.mrf.mxu0
    %v902 = vadd.f32 %v55, %v901
    %903 = vdwg.mxu0
    %904 = vmatpush.msra.mxu0 0.0
    %905 = vmatpush.msra.mxu0 0.0
    %906 = vmatpush.msra.mxu0 0.0
    %907 = vmatpush.msra.mxu0 0.0
    %908 = vmatpush.msra.mxu0 0.0
    %909 = vmatpush.msra.mxu0 0.0
    %910 = vmatpush.msra.mxu0 0.0
    %911 = vmatpush.msra.mxu0 0.0
    %912 = vmatpush.msra.mxu0 0.0
    %913 = vmatpush.msra.mxu0 0.0
    %914 = vmatpush.msra.mxu0 %v37
    %915 = vmatpush.msra.mxu0 %v35
    %916 = vmatpush.msra.mxu0 %v33
    %917 = vmatpush.msra.mxu0 %v31
    %918 = vmatpush.msra.mxu0 %v29
    %919 = vmatpush.msra.mxu0 %v27
    %920 = vmatmul.f32.gmra.mxu0 %v882
    %v921 = vpop.f32.mrf.mxu0
    %v922 = vadd.f32 %v56, %v921
    %923 = vdwg.mxu0
    %925 = vrot.lane.b32.xlu0 %v902, 32
    %v926 = vpop.permute.xlu0 %925
    %v928 = vadd.f32 %v902, %v926
    %v929 = vxor.u32 %v928, 2147483648
    %v930 = vmul.f32 %v929, 1.442695
    %v931 = vpow.pop %v930
    %v932 = vadd.f32 %v931, 1.0
    %v933 = vrcp.pop %v932
    %v934 = vmul.f32 %v932, %v933
    %v935 = vsub.f32 1.0, %v934
    %v936 = vmul.f32 %v933, %v935
    %v937 = vadd.f32 %v933, %v936
    %vm938 = vweird.f32 %v932
    %vm939 = vweird.f32 %v933
    %vm940 = vmor %vm938, %vm939
    %v941 = vsel %vm940, %v933, %v937
    %v942 = vand.u32 2147483647, %v932
    %vm943 = vcmp.eq.f32.partialorder %v942, 8.507059e+37
    %v944 = vand.u32 %v932, 2147483648
    %v945 = vor.u32 1.1754944e-38, %v944
    %v946 = vsel %vm943, %v945, %v941
    %v947 = vmul.f32 1.0, %v946
    %949 = vrot.lane.b32.xlu0 %v922, 32
    %v950 = vpop.permute.xlu0 %949
    %v952 = vadd.f32 %v902, %v950
    %v953 = vxor.u32 %v952, 2147483648
    %v954 = vmul.f32 %v953, 1.442695
    %v955 = vpow.pop %v954
    %v956 = vadd.f32 %v955, 1.0
    %v957 = vrcp.pop %v956
    %v958 = vmul.f32 %v956, %v957
    %v959 = vsub.f32 1.0, %v958
    %v960 = vmul.f32 %v957, %v959
    %v961 = vadd.f32 %v957, %v960
    %vm962 = vweird.f32 %v956
    %vm963 = vweird.f32 %v957
    %vm964 = vmor %vm962, %vm963
    %v965 = vsel %vm964, %v957, %v961
    %v966 = vand.u32 2147483647, %v956
    %vm967 = vcmp.eq.f32.partialorder %v966, 8.507059e+37
    %v968 = vand.u32 %v956, 2147483648
    %v969 = vor.u32 1.1754944e-38, %v968
    %v970 = vsel %vm967, %v969, %v965
    %v971 = vmul.f32 1.0, %v970
    %972 = vrot.lane.b32.xlu0 %v922, 96
    %v973 = vpop.permute.xlu0 %972
    %v975 = vmul.f32 %v947, %v973
    %977 = vrot.lane.b32.xlu0 %v975, 64
    %v978 = vpop.permute.xlu0 %977
    %v980 = vadd.f32 %v902, %v978
    %v981 = vtanh.pop %v980
    %v982 = vsub.f32 1.0, %v971
    %984 = vrot.lane.b32.xlu0 %v981, 96
    %v985 = vpop.permute.xlu0 %984
    %v987 = vmul.f32 %v982, %v985
    %v988 = vmul.f32 %v971, %v826
    %v989 = vadd.f32 %v987, %v988
    %991 = vrot.lane.b32.xlu0 %v989, 96
    %v992 = vpop.permute.xlu0 %991
    %v993 = vsel %vm178, %v992, 0
    %995 = vmatpush.msra.mxu0 0.0
    %996 = vmatpush.msra.mxu0 0.0
    %997 = vmatpush.msra.mxu0 0.0
    %998 = vmatpush.msra.mxu0 0.0
    %999 = vmatpush.msra.mxu0 0.0
    %1000 = vmatpush.msra.mxu0 0.0
    %1001 = vmatpush.msra.mxu0 0.0
    %1002 = vmatpush.msra.mxu0 0.0
    %1003 = vmatpush.msra.mxu0 0.0
    %1004 = vmatpush.msra.mxu0 0.0
    %1005 = vmatpush.msra.mxu0 0.0
    %1006 = vmatpush.msra.mxu0 0.0
    %1007 = vmatpush.msra.mxu0 %v42
    %1008 = vmatpush.msra.mxu0 %v41
    %1009 = vmatpush.msra.mxu0 %v40
    %1010 = vmatpush.msra.mxu0 %v39
    %1011 = vmatmul.f32.gmra.mxu0 %v993
    %v1012 = vpop.f32.mrf.mxu0
    %v1013 = vadd.f32 %v173, %v1012
    %1014 = vdwg.mxu0
    %s1015 = scalar_lea.vmem [#allocation2], 40
    %1016 = vst.msk [vmem:[%s1015] sm:$0xff] %vm52, %v1013
    %v1017 = vsel %vm52, %v1013, -inf
    %1018 = vmax.xlane.f32.xlu0 %v1017
    %v1019 = vpop.xlane.xlu0 %1018
    %vm1020 = vcmp.eq.f32.partialorder %v1013, %v1019
    %v1021 = vsel %vm1020, %v25, 16
    %v1022 = vsel %vm52, %v1021, 2147483647
    %v1023 = vand.u32 %v1022, 65535
    %v1024 = vshra.s32 %v1022, 16
    %v1025 = vcvt.s32.f32 %v1023
    %v1026 = vcvt.s32.f32 %v1024
    %1027 = vmin.xlane.f32.xlu0 %v1026
    %v1028 = vpop.xlane.xlu0 %1027
    %vm1029 = vcmp.eq.f32.partialorder %v1026, %v1028
    %v1030 = vsel %vm1029, %v1025, inf
    %1031 = vmin.xlane.f32.xlu0 %v1030
    %v1032 = vpop.xlane.xlu0 %1031
    %v1033 = vcvt.f32.s32 %v1032
    %v1034 = vcvt.f32.s32 %v1028
    %v1035 = vshll.u32 %v1034, 16
    %v1036 = vadd.s32 %v1035, %v1033
    %vm1037 = vcmp.eq.s32.totalorder %v25, %v1036
    %v1038 = vsel %vm1037, 1, 0
    %v1039 = vcvt.s32.f32 %v1038
    %1040 = vrot.lane.b32.xlu0 %v989, 112
    %v1041 = vpop.permute.xlu0 %1040
    %v1043 = vsel %vm52, %v1039, %v1041
    %v1045 = vsel %vm59, %v1043, 0
    %1047 = vmatpush.msra.mxu0 0.0
    %1048 = vmatpush.msra.mxu0 0.0
    %1049 = vmatpush.msra.mxu0 0.0
    %1050 = vmatpush.msra.mxu0 0.0
    %1051 = vmatpush.msra.mxu0 0.0
    %1052 = vmatpush.msra.mxu0 0.0
    %1053 = vmatpush.msra.mxu0 0.0
    %1054 = vmatpush.msra.mxu0 0.0
    %1055 = vmatpush.msra.mxu0 0.0
    %1056 = vmatpush.msra.mxu0 0.0
    %1057 = vmatpush.msra.mxu0 %v36
    %1058 = vmatpush.msra.mxu0 %v34
    %1059 = vmatpush.msra.mxu0 %v32
    %1060 = vmatpush.msra.mxu0 %v30
    %1061 = vmatpush.msra.mxu0 %v28
    %1062 = vmatpush.msra.mxu0 %v26
    %1063 = vmatmul.f32.gmra.mxu0 %v1045
    %v1064 = vpop.f32.mrf.mxu0
    %v1065 = vadd.f32 %v55, %v1064
    %1066 = vdwg.mxu0
    %1067 = vmatpush.msra.mxu0 0.0
    %1068 = vmatpush.msra.mxu0 0.0
    %1069 = vmatpush.msra.mxu0 0.0
    %1070 = vmatpush.msra.mxu0 0.0
    %1071 = vmatpush.msra.mxu0 0.0
    %1072 = vmatpush.msra.mxu0 0.0
    %1073 = vmatpush.msra.mxu0 0.0
    %1074 = vmatpush.msra.mxu0 0.0
    %1075 = vmatpush.msra.mxu0 0.0
    %1076 = vmatpush.msra.mxu0 0.0
    %1077 = vmatpush.msra.mxu0 %v37
    %1078 = vmatpush.msra.mxu0 %v35
    %1079 = vmatpush.msra.mxu0 %v33
    %1080 = vmatpush.msra.mxu0 %v31
    %1081 = vmatpush.msra.mxu0 %v29
    %1082 = vmatpush.msra.mxu0 %v27
    %1083 = vmatmul.f32.gmra.mxu0 %v1045
    %v1084 = vpop.f32.mrf.mxu0
    %v1085 = vadd.f32 %v56, %v1084
    %1086 = vdwg.mxu0
    %1088 = vrot.lane.b32.xlu0 %v1065, 32
    %v1089 = vpop.permute.xlu0 %1088
    %v1091 = vadd.f32 %v1065, %v1089
    %v1092 = vxor.u32 %v1091, 2147483648
    %v1093 = vmul.f32 %v1092, 1.442695
    %v1094 = vpow.pop %v1093
    %v1095 = vadd.f32 %v1094, 1.0
    %v1096 = vrcp.pop %v1095
    %v1097 = vmul.f32 %v1095, %v1096
    %v1098 = vsub.f32 1.0, %v1097
    %v1099 = vmul.f32 %v1096, %v1098
    %v1100 = vadd.f32 %v1096, %v1099
    %vm1101 = vweird.f32 %v1095
    %vm1102 = vweird.f32 %v1096
    %vm1103 = vmor %vm1101, %vm1102
    %v1104 = vsel %vm1103, %v1096, %v1100
    %v1105 = vand.u32 2147483647, %v1095
    %vm1106 = vcmp.eq.f32.partialorder %v1105, 8.507059e+37
    %v1107 = vand.u32 %v1095, 2147483648
    %v1108 = vor.u32 1.1754944e-38, %v1107
    %v1109 = vsel %vm1106, %v1108, %v1104
    %v1110 = vmul.f32 1.0, %v1109
    %1112 = vrot.lane.b32.xlu0 %v1085, 32
    %v1113 = vpop.permute.xlu0 %1112
    %v1115 = vadd.f32 %v1065, %v1113
    %v1116 = vxor.u32 %v1115, 2147483648
    %v1117 = vmul.f32 %v1116, 1.442695
    %v1118 = vpow.pop %v1117
    %v1119 = vadd.f32 %v1118, 1.0
    %v1120 = vrcp.pop %v1119
    %v1121 = vmul.f32 %v1119, %v1120
    %v1122 = vsub.f32 1.0, %v1121
    %v1123 = vmul.f32 %v1120, %v1122
    %v1124 = vadd.f32 %v1120, %v1123
    %vm1125 = vweird.f32 %v1119
    %vm1126 = vweird.f32 %v1120
    %vm1127 = vmor %vm1125, %vm1126
    %v1128 = vsel %vm1127, %v1120, %v1124
    %v1129 = vand.u32 2147483647, %v1119
    %vm1130 = vcmp.eq.f32.partialorder %v1129, 8.507059e+37
    %v1131 = vand.u32 %v1119, 2147483648
    %v1132 = vor.u32 1.1754944e-38, %v1131
    %v1133 = vsel %vm1130, %v1132, %v1128
    %v1134 = vmul.f32 1.0, %v1133
    %1135 = vrot.lane.b32.xlu0 %v1085, 96
    %v1136 = vpop.permute.xlu0 %1135
    %v1138 = vmul.f32 %v1110, %v1136
    %1140 = vrot.lane.b32.xlu0 %v1138, 64
    %v1141 = vpop.permute.xlu0 %1140
    %v1143 = vadd.f32 %v1065, %v1141
    %v1144 = vtanh.pop %v1143
    %v1145 = vsub.f32 1.0, %v1134
    %1147 = vrot.lane.b32.xlu0 %v1144, 96
    %v1148 = vpop.permute.xlu0 %1147
    %v1150 = vmul.f32 %v1145, %v1148
    %v1151 = vmul.f32 %v1134, %v989
    %v1152 = vadd.f32 %v1150, %v1151
    %1154 = vrot.lane.b32.xlu0 %v1152, 96
    %v1155 = vpop.permute.xlu0 %1154
    %v1156 = vsel %vm178, %v1155, 0
    %1158 = vmatpush.msra.mxu0 0.0
    %1159 = vmatpush.msra.mxu0 0.0
    %1160 = vmatpush.msra.mxu0 0.0
    %1161 = vmatpush.msra.mxu0 0.0
    %1162 = vmatpush.msra.mxu0 0.0
    %1163 = vmatpush.msra.mxu0 0.0
    %1164 = vmatpush.msra.mxu0 0.0
    %1165 = vmatpush.msra.mxu0 0.0
    %1166 = vmatpush.msra.mxu0 0.0
    %1167 = vmatpush.msra.mxu0 0.0
    %1168 = vmatpush.msra.mxu0 0.0
    %1169 = vmatpush.msra.mxu0 0.0
    %1170 = vmatpush.msra.mxu0 %v42
    %1171 = vmatpush.msra.mxu0 %v41
    %1172 = vmatpush.msra.mxu0 %v40
    %1173 = vmatpush.msra.mxu0 %v39
    %1174 = vmatmul.f32.gmra.mxu0 %v1156
    %v1175 = vpop.f32.mrf.mxu0
    %v1176 = vadd.f32 %v173, %v1175
    %1177 = vdwg.mxu0
    %s1178 = scalar_lea.vmem [#allocation2], 48
    %1179 = vst.msk [vmem:[%s1178] sm:$0xff] %vm52, %v1176
    %v1180 = vsel %vm52, %v1176, -inf
    %1181 = vmax.xlane.f32.xlu0 %v1180
    %v1182 = vpop.xlane.xlu0 %1181
    %vm1183 = vcmp.eq.f32.partialorder %v1176, %v1182
    %v1184 = vsel %vm1183, %v25, 16
    %v1185 = vsel %vm52, %v1184, 2147483647
    %v1186 = vand.u32 %v1185, 65535
    %v1187 = vshra.s32 %v1185, 16
    %v1188 = vcvt.s32.f32 %v1186
    %v1189 = vcvt.s32.f32 %v1187
    %1190 = vmin.xlane.f32.xlu0 %v1189
    %v1191 = vpop.xlane.xlu0 %1190
    %vm1192 = vcmp.eq.f32.partialorder %v1189, %v1191
    %v1193 = vsel %vm1192, %v1188, inf
    %1194 = vmin.xlane.f32.xlu0 %v1193
    %v1195 = vpop.xlane.xlu0 %1194
    %v1196 = vcvt.f32.s32 %v1195
    %v1197 = vcvt.f32.s32 %v1191
    %v1198 = vshll.u32 %v1197, 16
    %v1199 = vadd.s32 %v1198, %v1196
    %vm1200 = vcmp.eq.s32.totalorder %v25, %v1199
    %v1201 = vsel %vm1200, 1, 0
    %v1202 = vcvt.s32.f32 %v1201
    %1203 = vrot.lane.b32.xlu0 %v1152, 112
    %v1204 = vpop.permute.xlu0 %1203
    %v1206 = vsel %vm52, %v1202, %v1204
    %v1208 = vsel %vm59, %v1206, 0
    %1210 = vmatpush.msra.mxu0 0.0
    %1211 = vmatpush.msra.mxu0 0.0
    %1212 = vmatpush.msra.mxu0 0.0
    %1213 = vmatpush.msra.mxu0 0.0
    %1214 = vmatpush.msra.mxu0 0.0
    %1215 = vmatpush.msra.mxu0 0.0
    %1216 = vmatpush.msra.mxu0 0.0
    %1217 = vmatpush.msra.mxu0 0.0
    %1218 = vmatpush.msra.mxu0 0.0
    %1219 = vmatpush.msra.mxu0 0.0
    %1220 = vmatpush.msra.mxu0 %v36
    %1221 = vmatpush.msra.mxu0 %v34
    %1222 = vmatpush.msra.mxu0 %v32
    %1223 = vmatpush.msra.mxu0 %v30
    %1224 = vmatpush.msra.mxu0 %v28
    %1225 = vmatpush.msra.mxu0 %v26
    %1226 = vmatmul.f32.gmra.mxu0 %v1208
    %v1227 = vpop.f32.mrf.mxu0
    %v1228 = vadd.f32 %v55, %v1227
    %1229 = vdwg.mxu0
    %1230 = vmatpush.msra.mxu0 0.0
    %1231 = vmatpush.msra.mxu0 0.0
    %1232 = vmatpush.msra.mxu0 0.0
    %1233 = vmatpush.msra.mxu0 0.0
    %1234 = vmatpush.msra.mxu0 0.0
    %1235 = vmatpush.msra.mxu0 0.0
    %1236 = vmatpush.msra.mxu0 0.0
    %1237 = vmatpush.msra.mxu0 0.0
    %1238 = vmatpush.msra.mxu0 0.0
    %1239 = vmatpush.msra.mxu0 0.0
    %1240 = vmatpush.msra.mxu0 %v37
    %1241 = vmatpush.msra.mxu0 %v35
    %1242 = vmatpush.msra.mxu0 %v33
    %1243 = vmatpush.msra.mxu0 %v31
    %1244 = vmatpush.msra.mxu0 %v29
    %1245 = vmatpush.msra.mxu0 %v27
    %1246 = vmatmul.f32.gmra.mxu0 %v1208
    %v1247 = vpop.f32.mrf.mxu0
    %v1248 = vadd.f32 %v56, %v1247
    %1249 = vdwg.mxu0
    %1251 = vrot.lane.b32.xlu0 %v1228, 32
    %v1252 = vpop.permute.xlu0 %1251
    %v1254 = vadd.f32 %v1228, %v1252
    %v1255 = vxor.u32 %v1254, 2147483648
    %v1256 = vmul.f32 %v1255, 1.442695
    %v1257 = vpow.pop %v1256
    %v1258 = vadd.f32 %v1257, 1.0
    %v1259 = vrcp.pop %v1258
    %v1260 = vmul.f32 %v1258, %v1259
    %v1261 = vsub.f32 1.0, %v1260
    %v1262 = vmul.f32 %v1259, %v1261
    %v1263 = vadd.f32 %v1259, %v1262
    %vm1264 = vweird.f32 %v1258
    %vm1265 = vweird.f32 %v1259
    %vm1266 = vmor %vm1264, %vm1265
    %v1267 = vsel %vm1266, %v1259, %v1263
    %v1268 = vand.u32 2147483647, %v1258
    %vm1269 = vcmp.eq.f32.partialorder %v1268, 8.507059e+37
    %v1270 = vand.u32 %v1258, 2147483648
    %v1271 = vor.u32 1.1754944e-38, %v1270
    %v1272 = vsel %vm1269, %v1271, %v1267
    %v1273 = vmul.f32 1.0, %v1272
    %1275 = vrot.lane.b32.xlu0 %v1248, 32
    %v1276 = vpop.permute.xlu0 %1275
    %v1278 = vadd.f32 %v1228, %v1276
    %v1279 = vxor.u32 %v1278, 2147483648
    %v1280 = vmul.f32 %v1279, 1.442695
    %v1281 = vpow.pop %v1280
    %v1282 = vadd.f32 %v1281, 1.0
    %v1283 = vrcp.pop %v1282
    %v1284 = vmul.f32 %v1282, %v1283
    %v1285 = vsub.f32 1.0, %v1284
    %v1286 = vmul.f32 %v1283, %v1285
    %v1287 = vadd.f32 %v1283, %v1286
    %vm1288 = vweird.f32 %v1282
    %vm1289 = vweird.f32 %v1283
    %vm1290 = vmor %vm1288, %vm1289
    %v1291 = vsel %vm1290, %v1283, %v1287
    %v1292 = vand.u32 2147483647, %v1282
    %vm1293 = vcmp.eq.f32.partialorder %v1292, 8.507059e+37
    %v1294 = vand.u32 %v1282, 2147483648
    %v1295 = vor.u32 1.1754944e-38, %v1294
    %v1296 = vsel %vm1293, %v1295, %v1291
    %v1297 = vmul.f32 1.0, %v1296
    %1298 = vrot.lane.b32.xlu0 %v1248, 96
    %v1299 = vpop.permute.xlu0 %1298
    %v1301 = vmul.f32 %v1273, %v1299
    %1303 = vrot.lane.b32.xlu0 %v1301, 64
    %v1304 = vpop.permute.xlu0 %1303
    %v1306 = vadd.f32 %v1228, %v1304
    %v1307 = vtanh.pop %v1306
    %v1308 = vsub.f32 1.0, %v1297
    %1310 = vrot.lane.b32.xlu0 %v1307, 96
    %v1311 = vpop.permute.xlu0 %1310
    %v1313 = vmul.f32 %v1308, %v1311
    %v1314 = vmul.f32 %v1297, %v1152
    %v1315 = vadd.f32 %v1313, %v1314
    %1317 = vrot.lane.b32.xlu0 %v1315, 96
    %v1318 = vpop.permute.xlu0 %1317
    %v1319 = vsel %vm178, %v1318, 0
    %1321 = vmatpush.msra.mxu0 0.0
    %1322 = vmatpush.msra.mxu0 0.0
    %1323 = vmatpush.msra.mxu0 0.0
    %1324 = vmatpush.msra.mxu0 0.0
    %1325 = vmatpush.msra.mxu0 0.0
    %1326 = vmatpush.msra.mxu0 0.0
    %1327 = vmatpush.msra.mxu0 0.0
    %1328 = vmatpush.msra.mxu0 0.0
    %1329 = vmatpush.msra.mxu0 0.0
    %1330 = vmatpush.msra.mxu0 0.0
    %1331 = vmatpush.msra.mxu0 0.0
    %1332 = vmatpush.msra.mxu0 0.0
    %1333 = vmatpush.msra.mxu0 %v42
    %1334 = vmatpush.msra.mxu0 %v41
    %1335 = vmatpush.msra.mxu0 %v40
    %1336 = vmatpush.msra.mxu0 %v39
    %1337 = vmatmul.f32.gmra.mxu0 %v1319
    %v1338 = vpop.f32.mrf.mxu0
    %v1339 = vadd.f32 %v173, %v1338
    %1340 = vdwg.mxu0
    %s1341 = scalar_lea.vmem [#allocation2], 56
    %1342 = vst.msk [vmem:[%s1341] sm:$0xff] %vm52, %v1339
    %v1343 = vsel %vm52, %v1339, -inf
    %1344 = vmax.xlane.f32.xlu0 %v1343
    %v1345 = vpop.xlane.xlu0 %1344
    %vm1346 = vcmp.eq.f32.partialorder %v1339, %v1345
    %v1347 = vsel %vm1346, %v25, 16
    %v1348 = vsel %vm52, %v1347, 2147483647
    %v1349 = vand.u32 %v1348, 65535
    %v1350 = vshra.s32 %v1348, 16
    %v1351 = vcvt.s32.f32 %v1349
    %v1352 = vcvt.s32.f32 %v1350
    %1353 = vmin.xlane.f32.xlu0 %v1352
    %v1354 = vpop.xlane.xlu0 %1353
    %vm1355 = vcmp.eq.f32.partialorder %v1352, %v1354
    %v1356 = vsel %vm1355, %v1351, inf
    %1357 = vmin.xlane.f32.xlu0 %v1356
    %v1358 = vpop.xlane.xlu0 %1357
    %v1359 = vcvt.f32.s32 %v1358
    %v1360 = vcvt.f32.s32 %v1354
    %v1361 = vshll.u32 %v1360, 16
    %v1362 = vadd.s32 %v1361, %v1359
    %vm1363 = vcmp.eq.s32.totalorder %v25, %v1362
    %v1364 = vsel %vm1363, 1, 0
    %v1365 = vcvt.s32.f32 %v1364
    %1366 = vrot.lane.b32.xlu0 %v1315, 112
    %v1367 = vpop.permute.xlu0 %1366
    %v1369 = vsel %vm52, %v1365, %v1367
    %v1371 = vsel %vm59, %v1369, 0
    %1373 = vmatpush.msra.mxu0 0.0
    %1374 = vmatpush.msra.mxu0 0.0
    %1375 = vmatpush.msra.mxu0 0.0
    %1376 = vmatpush.msra.mxu0 0.0
    %1377 = vmatpush.msra.mxu0 0.0
    %1378 = vmatpush.msra.mxu0 0.0
    %1379 = vmatpush.msra.mxu0 0.0
    %1380 = vmatpush.msra.mxu0 0.0
    %1381 = vmatpush.msra.mxu0 0.0
    %1382 = vmatpush.msra.mxu0 0.0
    %1383 = vmatpush.msra.mxu0 %v36
    %1384 = vmatpush.msra.mxu0 %v34
    %1385 = vmatpush.msra.mxu0 %v32
    %1386 = vmatpush.msra.mxu0 %v30
    %1387 = vmatpush.msra.mxu0 %v28
    %1388 = vmatpush.msra.mxu0 %v26
    %1389 = vmatmul.f32.gmra.mxu0 %v1371
    %v1390 = vpop.f32.mrf.mxu0
    %v1391 = vadd.f32 %v55, %v1390
    %1392 = vdwg.mxu0
    %1393 = vmatpush.msra.mxu0 0.0
    %1394 = vmatpush.msra.mxu0 0.0
    %1395 = vmatpush.msra.mxu0 0.0
    %1396 = vmatpush.msra.mxu0 0.0
    %1397 = vmatpush.msra.mxu0 0.0
    %1398 = vmatpush.msra.mxu0 0.0
    %1399 = vmatpush.msra.mxu0 0.0
    %1400 = vmatpush.msra.mxu0 0.0
    %1401 = vmatpush.msra.mxu0 0.0
    %1402 = vmatpush.msra.mxu0 0.0
    %1403 = vmatpush.msra.mxu0 %v37
    %1404 = vmatpush.msra.mxu0 %v35
    %1405 = vmatpush.msra.mxu0 %v33
    %1406 = vmatpush.msra.mxu0 %v31
    %1407 = vmatpush.msra.mxu0 %v29
    %1408 = vmatpush.msra.mxu0 %v27
    %1409 = vmatmul.f32.gmra.mxu0 %v1371
    %v1410 = vpop.f32.mrf.mxu0
    %v1411 = vadd.f32 %v56, %v1410
    %1412 = vdwg.mxu0
    %1414 = vrot.lane.b32.xlu0 %v1391, 32
    %v1415 = vpop.permute.xlu0 %1414
    %v1417 = vadd.f32 %v1391, %v1415
    %v1418 = vxor.u32 %v1417, 2147483648
    %v1419 = vmul.f32 %v1418, 1.442695
    %v1420 = vpow.pop %v1419
    %v1421 = vadd.f32 %v1420, 1.0
    %v1422 = vrcp.pop %v1421
    %v1423 = vmul.f32 %v1421, %v1422
    %v1424 = vsub.f32 1.0, %v1423
    %v1425 = vmul.f32 %v1422, %v1424
    %v1426 = vadd.f32 %v1422, %v1425
    %vm1427 = vweird.f32 %v1421
    %vm1428 = vweird.f32 %v1422
    %vm1429 = vmor %vm1427, %vm1428
    %v1430 = vsel %vm1429, %v1422, %v1426
    %v1431 = vand.u32 2147483647, %v1421
    %vm1432 = vcmp.eq.f32.partialorder %v1431, 8.507059e+37
    %v1433 = vand.u32 %v1421, 2147483648
    %v1434 = vor.u32 1.1754944e-38, %v1433
    %v1435 = vsel %vm1432, %v1434, %v1430
    %v1436 = vmul.f32 1.0, %v1435
    %1438 = vrot.lane.b32.xlu0 %v1411, 32
    %v1439 = vpop.permute.xlu0 %1438
    %v1441 = vadd.f32 %v1391, %v1439
    %v1442 = vxor.u32 %v1441, 2147483648
    %v1443 = vmul.f32 %v1442, 1.442695
    %v1444 = vpow.pop %v1443
    %v1445 = vadd.f32 %v1444, 1.0
    %v1446 = vrcp.pop %v1445
    %v1447 = vmul.f32 %v1445, %v1446
    %v1448 = vsub.f32 1.0, %v1447
    %v1449 = vmul.f32 %v1446, %v1448
    %v1450 = vadd.f32 %v1446, %v1449
    %vm1451 = vweird.f32 %v1445
    %vm1452 = vweird.f32 %v1446
    %vm1453 = vmor %vm1451, %vm1452
    %v1454 = vsel %vm1453, %v1446, %v1450
    %v1455 = vand.u32 2147483647, %v1445
    %vm1456 = vcmp.eq.f32.partialorder %v1455, 8.507059e+37
    %v1457 = vand.u32 %v1445, 2147483648
    %v1458 = vor.u32 1.1754944e-38, %v1457
    %v1459 = vsel %vm1456, %v1458, %v1454
    %v1460 = vmul.f32 1.0, %v1459
    %1461 = vrot.lane.b32.xlu0 %v1411, 96
    %v1462 = vpop.permute.xlu0 %1461
    %v1464 = vmul.f32 %v1436, %v1462
    %1466 = vrot.lane.b32.xlu0 %v1464, 64
    %v1467 = vpop.permute.xlu0 %1466
    %v1469 = vadd.f32 %v1391, %v1467
    %v1470 = vtanh.pop %v1469
    %v1471 = vsub.f32 1.0, %v1460
    %1473 = vrot.lane.b32.xlu0 %v1470, 96
    %v1474 = vpop.permute.xlu0 %1473
    %v1476 = vmul.f32 %v1471, %v1474
    %v1477 = vmul.f32 %v1460, %v1315
    %v1478 = vadd.f32 %v1476, %v1477
    %1480 = vrot.lane.b32.xlu0 %v1478, 96
    %v1481 = vpop.permute.xlu0 %1480
    %v1482 = vsel %vm178, %v1481, 0
    %1484 = vmatpush.msra.mxu0 0.0
    %1485 = vmatpush.msra.mxu0 0.0
    %1486 = vmatpush.msra.mxu0 0.0
    %1487 = vmatpush.msra.mxu0 0.0
    %1488 = vmatpush.msra.mxu0 0.0
    %1489 = vmatpush.msra.mxu0 0.0
    %1490 = vmatpush.msra.mxu0 0.0
    %1491 = vmatpush.msra.mxu0 0.0
    %1492 = vmatpush.msra.mxu0 0.0
    %1493 = vmatpush.msra.mxu0 0.0
    %1494 = vmatpush.msra.mxu0 0.0
    %1495 = vmatpush.msra.mxu0 0.0
    %1496 = vmatpush.msra.mxu0 %v42
    %1497 = vmatpush.msra.mxu0 %v41
    %1498 = vmatpush.msra.mxu0 %v40
    %1499 = vmatpush.msra.mxu0 %v39
    %1500 = vmatmul.f32.gmra.mxu0 %v1482
    %v1501 = vpop.f32.mrf.mxu0
    %v1502 = vadd.f32 %v173, %v1501
    %1503 = vdwg.mxu0
    %s1504 = scalar_lea.vmem [#allocation2], 64
    %1505 = vst.msk [vmem:[%s1504] sm:$0xff] %vm52, %v1502
    %v1506 = vsel %vm52, %v1502, -inf
    %1507 = vmax.xlane.f32.xlu0 %v1506
    %v1508 = vpop.xlane.xlu0 %1507
    %vm1509 = vcmp.eq.f32.partialorder %v1502, %v1508
    %v1510 = vsel %vm1509, %v25, 16
    %v1511 = vsel %vm52, %v1510, 2147483647
    %v1512 = vand.u32 %v1511, 65535
    %v1513 = vshra.s32 %v1511, 16
    %v1514 = vcvt.s32.f32 %v1512
    %v1515 = vcvt.s32.f32 %v1513
    %1516 = vmin.xlane.f32.xlu0 %v1515
    %v1517 = vpop.xlane.xlu0 %1516
    %vm1518 = vcmp.eq.f32.partialorder %v1515, %v1517
    %v1519 = vsel %vm1518, %v1514, inf
    %1520 = vmin.xlane.f32.xlu0 %v1519
    %v1521 = vpop.xlane.xlu0 %1520
    %v1522 = vcvt.f32.s32 %v1521
    %v1523 = vcvt.f32.s32 %v1517
    %v1524 = vshll.u32 %v1523, 16
    %v1525 = vadd.s32 %v1524, %v1522
    %vm1526 = vcmp.eq.s32.totalorder %v25, %v1525
    %v1527 = vsel %vm1526, 1, 0
    %v1528 = vcvt.s32.f32 %v1527
    %1529 = vrot.lane.b32.xlu0 %v1478, 112
    %v1530 = vpop.permute.xlu0 %1529
    %v1532 = vsel %vm52, %v1528, %v1530
    %v1534 = vsel %vm59, %v1532, 0
    %1536 = vmatpush.msra.mxu0 0.0
    %1537 = vmatpush.msra.mxu0 0.0
    %1538 = vmatpush.msra.mxu0 0.0
    %1539 = vmatpush.msra.mxu0 0.0
    %1540 = vmatpush.msra.mxu0 0.0
    %1541 = vmatpush.msra.mxu0 0.0
    %1542 = vmatpush.msra.mxu0 0.0
    %1543 = vmatpush.msra.mxu0 0.0
    %1544 = vmatpush.msra.mxu0 0.0
    %1545 = vmatpush.msra.mxu0 0.0
    %1546 = vmatpush.msra.mxu0 %v36
    %1547 = vmatpush.msra.mxu0 %v34
    %1548 = vmatpush.msra.mxu0 %v32
    %1549 = vmatpush.msra.mxu0 %v30
    %1550 = vmatpush.msra.mxu0 %v28
    %1551 = vmatpush.msra.mxu0 %v26
    %1552 = vmatmul.f32.gmra.mxu0 %v1534
    %v1553 = vpop.f32.mrf.mxu0
    %v1554 = vadd.f32 %v55, %v1553
    %1555 = vdwg.mxu0
    %1556 = vmatpush.msra.mxu0 0.0
    %1557 = vmatpush.msra.mxu0 0.0
    %1558 = vmatpush.msra.mxu0 0.0
    %1559 = vmatpush.msra.mxu0 0.0
    %1560 = vmatpush.msra.mxu0 0.0
    %1561 = vmatpush.msra.mxu0 0.0
    %1562 = vmatpush.msra.mxu0 0.0
    %1563 = vmatpush.msra.mxu0 0.0
    %1564 = vmatpush.msra.mxu0 0.0
    %1565 = vmatpush.msra.mxu0 0.0
    %1566 = vmatpush.msra.mxu0 %v37
    %1567 = vmatpush.msra.mxu0 %v35
    %1568 = vmatpush.msra.mxu0 %v33
    %1569 = vmatpush.msra.mxu0 %v31
    %1570 = vmatpush.msra.mxu0 %v29
    %1571 = vmatpush.msra.mxu0 %v27
    %1572 = vmatmul.f32.gmra.mxu0 %v1534
    %v1573 = vpop.f32.mrf.mxu0
    %v1574 = vadd.f32 %v56, %v1573
    %1575 = vdwg.mxu0
    %1577 = vrot.lane.b32.xlu0 %v1554, 32
    %v1578 = vpop.permute.xlu0 %1577
    %v1580 = vadd.f32 %v1554, %v1578
    %v1581 = vxor.u32 %v1580, 2147483648
    %v1582 = vmul.f32 %v1581, 1.442695
    %v1583 = vpow.pop %v1582
    %v1584 = vadd.f32 %v1583, 1.0
    %v1585 = vrcp.pop %v1584
    %v1586 = vmul.f32 %v1584, %v1585
    %v1587 = vsub.f32 1.0, %v1586
    %v1588 = vmul.f32 %v1585, %v1587
    %v1589 = vadd.f32 %v1585, %v1588
    %vm1590 = vweird.f32 %v1584
    %vm1591 = vweird.f32 %v1585
    %vm1592 = vmor %vm1590, %vm1591
    %v1593 = vsel %vm1592, %v1585, %v1589
    %v1594 = vand.u32 2147483647, %v1584
    %vm1595 = vcmp.eq.f32.partialorder %v1594, 8.507059e+37
    %v1596 = vand.u32 %v1584, 2147483648
    %v1597 = vor.u32 1.1754944e-38, %v1596
    %v1598 = vsel %vm1595, %v1597, %v1593
    %v1599 = vmul.f32 1.0, %v1598
    %1601 = vrot.lane.b32.xlu0 %v1574, 32
    %v1602 = vpop.permute.xlu0 %1601
    %v1604 = vadd.f32 %v1554, %v1602
    %v1605 = vxor.u32 %v1604, 2147483648
    %v1606 = vmul.f32 %v1605, 1.442695
    %v1607 = vpow.pop %v1606
    %v1608 = vadd.f32 %v1607, 1.0
    %v1609 = vrcp.pop %v1608
    %v1610 = vmul.f32 %v1608, %v1609
    %v1611 = vsub.f32 1.0, %v1610
    %v1612 = vmul.f32 %v1609, %v1611
    %v1613 = vadd.f32 %v1609, %v1612
    %vm1614 = vweird.f32 %v1608
    %vm1615 = vweird.f32 %v1609
    %vm1616 = vmor %vm1614, %vm1615
    %v1617 = vsel %vm1616, %v1609, %v1613
    %v1618 = vand.u32 2147483647, %v1608
    %vm1619 = vcmp.eq.f32.partialorder %v1618, 8.507059e+37
    %v1620 = vand.u32 %v1608, 2147483648
    %v1621 = vor.u32 1.1754944e-38, %v1620
    %v1622 = vsel %vm1619, %v1621, %v1617
    %v1623 = vmul.f32 1.0, %v1622
    %1624 = vrot.lane.b32.xlu0 %v1574, 96
    %v1625 = vpop.permute.xlu0 %1624
    %v1627 = vmul.f32 %v1599, %v1625
    %1629 = vrot.lane.b32.xlu0 %v1627, 64
    %v1630 = vpop.permute.xlu0 %1629
    %v1632 = vadd.f32 %v1554, %v1630
    %v1633 = vtanh.pop %v1632
    %v1634 = vsub.f32 1.0, %v1623
    %1636 = vrot.lane.b32.xlu0 %v1633, 96
    %v1637 = vpop.permute.xlu0 %1636
    %v1639 = vmul.f32 %v1634, %v1637
    %v1640 = vmul.f32 %v1623, %v1478
    %v1641 = vadd.f32 %v1639, %v1640
    %1643 = vrot.lane.b32.xlu0 %v1641, 96
    %v1644 = vpop.permute.xlu0 %1643
    %v1645 = vsel %vm178, %v1644, 0
    %1647 = vmatpush.msra.mxu0 0.0
    %1648 = vmatpush.msra.mxu0 0.0
    %1649 = vmatpush.msra.mxu0 0.0
    %1650 = vmatpush.msra.mxu0 0.0
    %1651 = vmatpush.msra.mxu0 0.0
    %1652 = vmatpush.msra.mxu0 0.0
    %1653 = vmatpush.msra.mxu0 0.0
    %1654 = vmatpush.msra.mxu0 0.0
    %1655 = vmatpush.msra.mxu0 0.0
    %1656 = vmatpush.msra.mxu0 0.0
    %1657 = vmatpush.msra.mxu0 0.0
    %1658 = vmatpush.msra.mxu0 0.0
    %1659 = vmatpush.msra.mxu0 %v42
    %1660 = vmatpush.msra.mxu0 %v41
    %1661 = vmatpush.msra.mxu0 %v40
    %1662 = vmatpush.msra.mxu0 %v39
    %1663 = vmatmul.f32.gmra.mxu0 %v1645
    %v1664 = vpop.f32.mrf.mxu0
    %v1665 = vadd.f32 %v173, %v1664
    %1666 = vdwg.mxu0
    %s1667 = scalar_lea.vmem [#allocation2], 72
    %1668 = vst.msk [vmem:[%s1667] sm:$0xff] %vm52, %v1665
    %1670 = vst.msk [vmem:[#allocation4] sm:$0xff] %vm178, %v1644
    %v1671 = vld [vmem:[#allocation2] sm:$0xff]
    %v1672 = vld [vmem:[#allocation2 + $0x8] sm:$0xff]
    %v1673 = vld [vmem:[#allocation2 + $0x10] sm:$0xff]
    %v1674 = vld [vmem:[#allocation2 + $0x18] sm:$0xff]
    %v1675 = vld [vmem:[#allocation2 + $0x20] sm:$0xff]
    %v1676 = vld [vmem:[#allocation2 + $0x28] sm:$0xff]
    %v1677 = vld [vmem:[#allocation2 + $0x30] sm:$0xff]
    %v1678 = vld [vmem:[#allocation2 + $0x38] sm:$0xff]
    %v1679 = vld [vmem:[#allocation2 + $0x40] sm:$0xff]
    %v1680 = vld [vmem:[#allocation2 + $0x48] sm:$0xff]
    %v1681 = vsel %vm52, %v1671, -inf
    %1682 = vmax.xlane.f32.xlu0 %v1681
    %v1683 = vpop.xlane.xlu0 %1682
    %v1684 = vsel %vm52, %v1672, -inf
    %1685 = vmax.xlane.f32.xlu0 %v1684
    %v1686 = vpop.xlane.xlu0 %1685
    %v1687 = vsel %vm52, %v1673, -inf
    %1688 = vmax.xlane.f32.xlu0 %v1687
    %v1689 = vpop.xlane.xlu0 %1688
    %v1690 = vsel %vm52, %v1674, -inf
    %1691 = vmax.xlane.f32.xlu0 %v1690
    %v1692 = vpop.xlane.xlu0 %1691
    %v1693 = vsel %vm52, %v1675, -inf
    %1694 = vmax.xlane.f32.xlu0 %v1693
    %v1695 = vpop.xlane.xlu0 %1694
    %v1696 = vsel %vm52, %v1676, -inf
    %1697 = vmax.xlane.f32.xlu0 %v1696
    %v1698 = vpop.xlane.xlu0 %1697
    %v1699 = vsel %vm52, %v1677, -inf
    %1700 = vmax.xlane.f32.xlu0 %v1699
    %v1701 = vpop.xlane.xlu0 %1700
    %v1702 = vsel %vm52, %v1678, -inf
    %1703 = vmax.xlane.f32.xlu0 %v1702
    %v1704 = vpop.xlane.xlu0 %1703
    %v1705 = vsel %vm52, %v1679, -inf
    %1706 = vmax.xlane.f32.xlu0 %v1705
    %v1707 = vpop.xlane.xlu0 %1706
    %v1708 = vsel %vm52, %v1680, -inf
    %1709 = vmax.xlane.f32.xlu0 %v1708
    %v1710 = vpop.xlane.xlu0 %1709
    %v1711 = vsub.f32 %v1671, %v1683
    %v1712 = vsub.f32 %v1672, %v1686
    %v1713 = vsub.f32 %v1673, %v1689
    %v1714 = vsub.f32 %v1674, %v1692
    %v1715 = vsub.f32 %v1675, %v1695
    %v1716 = vsub.f32 %v1676, %v1698
    %v1717 = vsub.f32 %v1677, %v1701
    %v1718 = vsub.f32 %v1678, %v1704
    %v1719 = vsub.f32 %v1679, %v1707
    %v1720 = vsub.f32 %v1680, %v1710
    %v1721 = vmul.f32 %v1711, 1.442695
    %v1722 = vpow.pop %v1721
    %v1723 = vmul.f32 %v1712, 1.442695
    %v1724 = vpow.pop %v1723
    %v1725 = vmul.f32 %v1713, 1.442695
    %v1726 = vpow.pop %v1725
    %v1727 = vmul.f32 %v1714, 1.442695
    %v1728 = vpow.pop %v1727
    %v1729 = vmul.f32 %v1715, 1.442695
    %v1730 = vpow.pop %v1729
    %v1731 = vmul.f32 %v1716, 1.442695
    %v1732 = vpow.pop %v1731
    %v1733 = vmul.f32 %v1717, 1.442695
    %v1734 = vpow.pop %v1733
    %v1735 = vmul.f32 %v1718, 1.442695
    %v1736 = vpow.pop %v1735
    %v1737 = vmul.f32 %v1719, 1.442695
    %v1738 = vpow.pop %v1737
    %v1739 = vmul.f32 %v1720, 1.442695
    %v1740 = vpow.pop %v1739
    %v1741 = vsel %vm52, %v1722, 0.0
    %1742 = vadd.xlane.f32.xlu0 %v1741
    %v1743 = vpop.xlane.xlu0 %1742
    %v1744 = vsel %vm52, %v1724, 0.0
    %1745 = vadd.xlane.f32.xlu0 %v1744
    %v1746 = vpop.xlane.xlu0 %1745
    %v1747 = vsel %vm52, %v1726, 0.0
    %1748 = vadd.xlane.f32.xlu0 %v1747
    %v1749 = vpop.xlane.xlu0 %1748
    %v1750 = vsel %vm52, %v1728, 0.0
    %1751 = vadd.xlane.f32.xlu0 %v1750
    %v1752 = vpop.xlane.xlu0 %1751
    %v1753 = vsel %vm52, %v1730, 0.0
    %1754 = vadd.xlane.f32.xlu0 %v1753
    %v1755 = vpop.xlane.xlu0 %1754
    %v1756 = vsel %vm52, %v1732, 0.0
    %1757 = vadd.xlane.f32.xlu0 %v1756
    %v1758 = vpop.xlane.xlu0 %1757
    %v1759 = vsel %vm52, %v1734, 0.0
    %1760 = vadd.xlane.f32.xlu0 %v1759
    %v1761 = vpop.xlane.xlu0 %1760
    %v1762 = vsel %vm52, %v1736, 0.0
    %1763 = vadd.xlane.f32.xlu0 %v1762
    %v1764 = vpop.xlane.xlu0 %1763
    %v1765 = vsel %vm52, %v1738, 0.0
    %1766 = vadd.xlane.f32.xlu0 %v1765
    %v1767 = vpop.xlane.xlu0 %1766
    %v1768 = vsel %vm52, %v1740, 0.0
    %1769 = vadd.xlane.f32.xlu0 %v1768
    %v1770 = vpop.xlane.xlu0 %1769
    %v1771 = vlog2.pop %v1743
    %v1772 = vmul.f32 %v1771, 0.6931472
    %v1773 = vlog2.pop %v1746
    %v1774 = vmul.f32 %v1773, 0.6931472
    %v1775 = vlog2.pop %v1749
    %v1776 = vmul.f32 %v1775, 0.6931472
    %v1777 = vlog2.pop %v1752
    %v1778 = vmul.f32 %v1777, 0.6931472
    %v1779 = vlog2.pop %v1755
    %v1780 = vmul.f32 %v1779, 0.6931472
    %v1781 = vlog2.pop %v1758
    %v1782 = vmul.f32 %v1781, 0.6931472
    %v1783 = vlog2.pop %v1761
    %v1784 = vmul.f32 %v1783, 0.6931472
    %v1785 = vlog2.pop %v1764
    %v1786 = vmul.f32 %v1785, 0.6931472
    %v1787 = vlog2.pop %v1767
    %v1788 = vmul.f32 %v1787, 0.6931472
    %v1789 = vlog2.pop %v1770
    %v1790 = vmul.f32 %v1789, 0.6931472
    %v1791 = vsub.f32 %v1711, %v1772
    %v1792 = vsub.f32 %v1712, %v1774
    %v1793 = vsub.f32 %v1713, %v1776
    %v1794 = vsub.f32 %v1714, %v1778
    %v1795 = vsub.f32 %v1715, %v1780
    %v1796 = vsub.f32 %v1716, %v1782
    %v1797 = vsub.f32 %v1717, %v1784
    %v1798 = vsub.f32 %v1718, %v1786
    %v1799 = vsub.f32 %v1719, %v1788
    %v1800 = vsub.f32 %v1720, %v1790
    %1801 = vst.msk [vmem:[#allocation2] sm:$0xff] %vm52, %v1791
    %1802 = vst.msk [vmem:[#allocation2 + $0x8] sm:$0xff] %vm52, %v1792
    %1803 = vst.msk [vmem:[#allocation2 + $0x10] sm:$0xff] %vm52, %v1793
    %1804 = vst.msk [vmem:[#allocation2 + $0x18] sm:$0xff] %vm52, %v1794
    %1805 = vst.msk [vmem:[#allocation2 + $0x20] sm:$0xff] %vm52, %v1795
    %1806 = vst.msk [vmem:[#allocation2 + $0x28] sm:$0xff] %vm52, %v1796
    %1807 = vst.msk [vmem:[#allocation2 + $0x30] sm:$0xff] %vm52, %v1797
    %1808 = vst.msk [vmem:[#allocation2 + $0x38] sm:$0xff] %vm52, %v1798
    %1809 = vst.msk [vmem:[#allocation2 + $0x40] sm:$0xff] %vm52, %v1799
    %1810 = vst.msk [vmem:[#allocation2 + $0x48] sm:$0xff] %vm52, %v1800
    // Predicated region
    $region22: #{decoder_forward.1} parent=1 // pred_check
      _
    $region23: #{decoder_forward.1} parent=1 // pred_check_branch
      %1812 = sbr.rel (0) target = $region25
    $region24: #{decoder_forward.1} parent=1 // pred_region
      %1814 = vsyncadd [#allocation3], 0
      %s1815 = sshll.u32 [#allocation2], 4
      %s1816 = int_to_ptr.vmem [resolvable:$true] %s1815
      %s1817 = sshll.u32 %s5, 4
      %s1818 = int_to_ptr.hbm [resolvable:$true] %s1817
      %1823 = dma.vmem_to_hbm [thread:$0]  %s1816, 1280, %s1818, [#allocation3], 128, 128, 8
    $region25: #{decoder_forward.1} parent=1 // pred_fallthru
      _
    // Predicated region
    $region26: #{decoder_forward.1} parent=1 // pred_check
      _
    $region27: #{decoder_forward.1} parent=1 // pred_check_branch
      %1825 = sbr.rel (0) target = $region29
    $region28: #{decoder_forward.1} parent=1 // pred_region
      %1827 = vsyncadd [#allocation5], 0
      %s1829 = sshll.u32 [#allocation4], 4
      %s1830 = int_to_ptr.vmem [resolvable:$true] %s1829
      %s1831 = sshll.u32 %s6, 4
      %s1832 = int_to_ptr.hbm [resolvable:$true] %s1831
      %1834 = dma.vmem_to_hbm [thread:$0]  %s1830, 128, %s1832, [#allocation5]
    $region29: #{decoder_forward.1} parent=1 // pred_fallthru
      _
    // Predicated region
    $region30: #{decoder_forward.1} parent=1 // pred_check
      _
    $region31: #{decoder_forward.1} parent=1 // pred_check_branch
      %1836 = sbr.rel (0) target = $region33
    $region32: #{decoder_forward.1} parent=1 // pred_region
      %1838 = dma.done [#allocation3], 1280
    $region33: #{decoder_forward.1} parent=1 // pred_fallthru
      _
    // Predicated region
    $region34: #{decoder_forward.1} parent=1 // pred_check
      _
    $region35: #{decoder_forward.1} parent=1 // pred_check_branch
      %1840 = sbr.rel (0) target = $region37
    $region36: #{decoder_forward.1} parent=1 // pred_region
      %1842 = dma.done [#allocation5], 128
    $region37: #{decoder_forward.1} parent=1 // pred_fallthru
      _
    %1843 = vsyncpa [#allocation3], 1
    %1844 = vsyncpa [#allocation5], 1

</llo_original>
